<compile_context>
chip_gen: v6e
topology: v6e:2x2x1
jax: 0.10.0
libtpu: 0.0.40
codegen_flags: <defaults>
</compile_context>

<pallas_src>
import numpy as np
import jax
import jax.numpy as jnp
from jax.experimental import pallas as pl
from jax.experimental.pallas import tpu as pltpu


def _round_up(n, m):
    return ((n + m - 1) // m) * m


def _build_field_mask(field_dims, Vp, C):
    """(Vp, C) f32 augmented field mask.

    Columns 0..F-1: 1.0 iff global slot v belongs to field f.
    Column  F     : offsets[field(v)] - v   (so mask @ [x; 1] == 0 exactly at the
                    slot selected by that field's index), and 1.0 for padded
                    slots v >= V so they can never match.
    Columns F+1.. : zero padding up to C (sublane-aligned).
    """
    field_dims = [int(d) for d in field_dims]
    F = len(field_dims)
    V = sum(field_dims)
    offsets = np.concatenate(([0], np.cumsum(field_dims)[:-1])).astype(np.int64)
    m = np.zeros((Vp, C), np.float32)
    for f, (off, dim) in enumerate(zip(offsets, field_dims)):
        m[off:off + dim, f] = 1.0
        m[off:off + dim, F] = off - np.arange(off, off + dim)
    m[V:, F] = 1.0  # padded vocab slots: g' = 1 != 0 -> never hit
    return jnp.asarray(m)


def _lr_kernel(x_ref, mask_ref, w_ref, bias_ref, out_ref, acc_ref):
    # x_ref:    (C, TB)  f32  rows 0..F-1 = field indices, row F = 1.0, rest 0
    # mask_ref: (TVp, C) f32  augmented field mask (see _build_field_mask)
    # w_ref:    (1, TVp) f32  embedding weights (output_dim == 1), zero-padded
    # bias_ref: (1,)     f32  SMEM scalar
    # out_ref:  (1, TB)  f32  lane-dense probability tile
    # acc_ref:  (1, TB)  f32  VMEM scratch accumulator over the vocab axis
    kv = pl.program_id(1)

    @pl.when(kv == 0)
    def _():
        acc_ref[...] = jnp.zeros_like(acc_ref)

    # g'[v, b] = x[b, field(v)] + offsets[field(v)] - v   (MXU, K = C = 8).
    # HIGHEST precision keeps integer-valued f32 exact for any field size.
    g = jnp.dot(mask_ref[...], x_ref[...],
                preferred_element_type=jnp.float32,
                precision=jax.lax.Precision.HIGHEST)
    # One hit per (owning field, batch element): 1 compare + 1 cast per element,
    # independent of F; no iota, no live (TVp, TB) accumulator across a loop.
    onehot = (g == 0.0).astype(jnp.float32)                        # (TVp, TB)
    # Vocab contraction on the MXU, natural (M,K)x(K,N) -> lane-dense (1, TB).
    acc_ref[...] += jnp.dot(w_ref[...], onehot,
                            preferred_element_type=jnp.float32,
                            precision=jax.lax.Precision.HIGHEST)

    @pl.when(kv == pl.num_programs(1) - 1)
    def _():
        out_ref[...] = jax.nn.sigmoid(acc_ref[...] + bias_ref[0])


def lr_forward(x, weight, bias, field_dims, *, tb=1024, tvp=512):
    """x: (B, F) int per-field indices; weight: (V,) f32 Embedding(.,1) weights;
    bias: (1,) f32; field_dims: static per-field cardinalities. Returns (B,)."""
    x = jnp.asarray(x)
    weight = jnp.asarray(weight, jnp.float32).reshape(-1)
    bias = jnp.asarray(bias, jnp.float32).reshape(-1)

    B, F = x.shape
    V = int(weight.shape[0])
    assert V == int(sum(int(d) for d in field_dims))

    C = _round_up(F + 1, 8)                       # index-tile sublane rows
    TVp = max(128, _round_up(min(tvp, _round_up(V, 128)), 128))
    Vp = _round_up(V, TVp)

    # Lane-dense batch tile (multiple of 128); capped at ceil(Bp/2) so the
    # "parallel" axis has >= 2 grid steps whenever Bp >= 256 (v7x has 2 TCs).
    Bp_min = _round_up(B, 128)
    tb_cap = _round_up(-(-Bp_min // 2), 128) if Bp_min >= 256 else Bp_min
    TB = max(128, min(_round_up(tb, 128), tb_cap))
    Bp = _round_up(B, TB)

    # Host-side constant prep.
    mask = _build_field_mask(field_dims, Vp, C)                    # (Vp, C)
    w2d = jnp.zeros((1, Vp), jnp.float32).at[0, :V].set(weight)    # (1, Vp)
    # Transposed + augmented index slab; padded batch columns produce garbage
    # logits that are sliced off below.
    xT = jnp.zeros((C, Bp), jnp.float32)
    xT = xT.at[:F, :B].set(x.astype(jnp.float32).T)
    xT = xT.at[F, :].set(1.0)

    out = pl.pallas_call(
        _lr_kernel,
        out_shape=jax.ShapeDtypeStruct((1, Bp), jnp.float32),
        grid=(Bp // TB, Vp // TVp),
        in_specs=[
            pl.BlockSpec((C, TB), lambda i, k: (0, i)),        # index tile (lane-dense)
            pl.BlockSpec((TVp, C), lambda i, k: (k, 0)),       # augmented field mask
            pl.BlockSpec((1, TVp), lambda i, k: (0, k)),       # embedding row tile
            pl.BlockSpec(memory_space=pltpu.MemorySpace.SMEM), # bias scalar
        ],
        out_specs=pl.BlockSpec((1, TB), lambda i, k: (0, i)),  # lane-dense output
        scratch_shapes=[pltpu.VMEM((1, TB), jnp.float32)],     # logits accumulator
        compiler_params=pltpu.CompilerParams(
            dimension_semantics=("parallel", "arbitrary")),
    )(xT, mask, w2d, bias)
    return out[0, :B]                                           # == .squeeze(1)


if __name__ == "__main__":
    # small synthetic config
    field_dims = [8, 16, 24, 32]
    V = sum(field_dims)                  # 80
    F = len(field_dims)
    B = 8

    key = jax.random.PRNGKey(0)
    kw, *kx = jax.random.split(key, 1 + F)

    # deterministic parameter init (Embedding(sum(field_dims), 1) + zero bias)
    weight = jax.random.uniform(kw, (V,), jnp.float32, minval=-0.1, maxval=0.1)
    bias = jnp.zeros((1,), jnp.float32)

    # deterministic inputs: one index per field, within that field's cardinality
    cols = [jax.random.randint(k, (B,), 0, d) for k, d in zip(kx, field_dims)]
    x = jnp.stack(cols, axis=1).astype(jnp.int32)                   # (B, F)

    y = jax.block_until_ready(lr_forward(x, weight, bias, field_dims))

    # pure-JAX reference check
    offsets = jnp.concatenate(
        [jnp.zeros((1,), jnp.int32),
         jnp.cumsum(jnp.array(field_dims, jnp.int32))[:-1]])
    idx = x + offsets[None, :]
    ref = jax.nn.sigmoid(jnp.sum(weight[idx], axis=1) + bias[0])
    assert y.shape == (B,)
    assert jnp.allclose(y, ref, atol=1e-6), (y, ref)

    print("KERNEL_OK")
</pallas_src>

<mosaic_0001>
module attributes {stable_mosaic.version = 11 : i64} {
  func.func @_lr_kernel(%arg0: i32, %arg1: i32, %arg2: memref<8x128xf32, #tpu.memory_space<vmem>>, %arg3: memref<128x8xf32, #tpu.memory_space<vmem>>, %arg4: memref<1x128xf32, #tpu.memory_space<vmem>>, %arg5: memref<1xf32, #tpu.memory_space<smem>>, %arg6: memref<1x128xf32, #tpu.memory_space<vmem>>, %arg7: memref<1x128xf32, #tpu.memory_space<vmem>>) attributes {dimension_semantics = [#tpu.dimension_semantics<parallel>, #tpu.dimension_semantics<arbitrary>], iteration_bounds = array<i64: 1, 1>, scalar_prefetch = 0 : i64, scratch_operands = 1 : i64, tpu.core_type = #tpu.core_type<tc>, window_params = [{transform_indices = @transform_0, window_bounds = array<i64: 8, 128>}, {transform_indices = @transform_1, window_bounds = array<i64: 128, 8>}, {transform_indices = @transform_2, window_bounds = array<i64: 1, 128>}, {transform_indices = @transform_3, window_bounds = array<i64: 1>}, {transform_indices = @transform_4, window_bounds = array<i64: 1, 128>}]} {
    %c0_i32 = arith.constant 0 : i32
    %0 = arith.cmpi eq, %arg1, %c0_i32 : i32
    %1 = arith.extui %0 : i1 to i32
    %c0_i32_0 = arith.constant 0 : i32
    %2 = arith.cmpi ne, %1, %c0_i32_0 : i32
    scf.if %2 {
      %cst_14 = arith.constant 0.000000e+00 : f32
      %18 = vector.broadcast %cst_14 : f32 to vector<1x128xf32>
      %c0_15 = arith.constant 0 : index
      %c0_16 = arith.constant 0 : index
      %19 = vector.load %arg7[%c0_15, %c0_16] : memref<1x128xf32, #tpu.memory_space<vmem>>, vector<1x128xf32>
      tpu.vector_store %arg7[%c0_15, %c0_16], %18 {strides = array<i32>} : memref<1x128xf32, #tpu.memory_space<vmem>>, vector<1x128xf32>,
    } else {
    }
    %c0 = arith.constant 0 : index
    %c0_1 = arith.constant 0 : index
    %3 = vector.load %arg3[%c0, %c0_1] : memref<128x8xf32, #tpu.memory_space<vmem>>, vector<128x8xf32>
    %c0_2 = arith.constant 0 : index
    %c0_3 = arith.constant 0 : index
    %4 = vector.load %arg2[%c0_2, %c0_3] : memref<8x128xf32, #tpu.memory_space<vmem>>, vector<8x128xf32>
    %cst = arith.constant dense<0.000000e+00> : vector<128x128xf32>
    %5 = tpu.matmul %3, %4, %cst {dimension_numbers = #tpu.dot_dimension_numbers<[1], [0], [0], [1], [0, 0, 1, 1], [], []>, precision = #tpu.contract_precision<fp32>} : vector<128x8xf32>, vector<8x128xf32>, vector<128x128xf32> -> vector<128x128xf32>
    %cst_4 = arith.constant 0.000000e+00 : f32
    %6 = vector.broadcast %cst_4 : f32 to vector<128x128xf32>
    %7 = arith.cmpf oeq, %5, %6 : vector<128x128xf32>
    %8 = arith.extui %7 : vector<128x128xi1> to vector<128x128xi32>
    %9 = arith.sitofp %8 : vector<128x128xi32> to vector<128x128xf32>
    %c0_5 = arith.constant 0 : index
    %c0_6 = arith.constant 0 : index
    %10 = vector.load %arg7[%c0_5, %c0_6] : memref<1x128xf32, #tpu.memory_space<vmem>>, vector<1x128xf32>
    %c0_7 = arith.constant 0 : index
    %c0_8 = arith.constant 0 : index
    %11 = vector.load %arg4[%c0_7, %c0_8] : memref<1x128xf32, #tpu.memory_space<vmem>>, vector<1x128xf32>
    %cst_9 = arith.constant dense<0.000000e+00> : vector<1x128xf32>
    %12 = tpu.matmul %11, %9, %cst_9 {dimension_numbers = #tpu.dot_dimension_numbers<[1], [0], [0], [1], [0, 0, 1, 1], [], []>, precision = #tpu.contract_precision<fp32>} : vector<1x128xf32>, vector<128x128xf32>, vector<1x128xf32> -> vector<1x128xf32>
    %13 = arith.addf %10, %12 : vector<1x128xf32>
    %c0_10 = arith.constant 0 : index
    %c0_11 = arith.constant 0 : index
    %14 = vector.load %arg7[%c0_10, %c0_11] : memref<1x128xf32, #tpu.memory_space<vmem>>, vector<1x128xf32>
    tpu.vector_store %arg7[%c0_10, %c0_11], %13 {strides = array<i32>} : memref<1x128xf32, #tpu.memory_space<vmem>>, vector<1x128xf32>,
    %c0_i32_12 = arith.constant 0 : i32
    %15 = arith.cmpi eq, %arg1, %c0_i32_12 : i32
    %16 = arith.extui %15 : i1 to i32
    %c0_i32_13 = arith.constant 0 : i32
    %17 = arith.cmpi ne, %16, %c0_i32_13 : i32
    scf.if %17 {
      %c0_14 = arith.constant 0 : index
      %c0_15 = arith.constant 0 : index
      %18 = vector.load %arg7[%c0_14, %c0_15] : memref<1x128xf32, #tpu.memory_space<vmem>>, vector<1x128xf32>
      %c0_16 = arith.constant 0 : index
      %19 = memref.load %arg5[%c0_16] : memref<1xf32, #tpu.memory_space<smem>>
      %20 = vector.broadcast %19 : f32 to vector<1x128xf32>
      %21 = arith.addf %18, %20 : vector<1x128xf32>
      %22 = arith.negf %21 : vector<1x128xf32>
      %23 = math.exp %22 : vector<1x128xf32>
      %cst_17 = arith.constant 1.000000e+00 : f32
      %24 = vector.broadcast %cst_17 : f32 to vector<1x128xf32>
      %25 = arith.addf %24, %23 : vector<1x128xf32>
      %26 = arith.divf %24, %25 : vector<1x128xf32>
      %c0_18 = arith.constant 0 : index
      %c0_19 = arith.constant 0 : index
      %27 = vector.load %arg6[%c0_18, %c0_19] : memref<1x128xf32, #tpu.memory_space<vmem>>, vector<1x128xf32>
      tpu.vector_store %arg6[%c0_18, %c0_19], %26 {strides = array<i32>} : memref<1x128xf32, #tpu.memory_space<vmem>>, vector<1x128xf32>,
    } else {
    }
    return
  }
  func.func @transform_0(%arg0: i32, %arg1: i32) -> (i32, i32) {
    %c0_i32 = arith.constant 0 : i32
    %c0_i32_0 = arith.constant 0 : i32
    return %c0_i32, %arg0 : i32, i32
  }
  func.func @transform_1(%arg0: i32, %arg1: i32) -> (i32, i32) {
    %c0_i32 = arith.constant 0 : i32
    %c0_i32_0 = arith.constant 0 : i32
    return %arg1, %c0_i32 : i32, i32
  }
  func.func @transform_2(%arg0: i32, %arg1: i32) -> (i32, i32) {
    %c0_i32 = arith.constant 0 : i32
    %c0_i32_0 = arith.constant 0 : i32
    return %c0_i32, %arg1 : i32, i32
  }
  func.func @transform_3(%arg0: i32, %arg1: i32) -> i32 {
    %c0_i32 = arith.constant 0 : i32
    %c0_i32_0 = arith.constant 0 : i32
    return %c0_i32 : i32
  }
  func.func @transform_4(%arg0: i32, %arg1: i32) -> (i32, i32) {
    %c0_i32 = arith.constant 0 : i32
    %c0_i32_0 = arith.constant 0 : i32
    return %c0_i32, %arg0 : i32, i32
  }
}

</mosaic_0001>

<llo_original>
// kernel: tpu_custom_call.1
$region0: #{tpu_custom_call.1}
  #allocation0 [shape = 'u32[]', space=smem, size = 0x4, offset = 0x4, fixed_abs, tag = 'smem constant byte address 0x4 - core index']
  #allocation1 [shape = 'u32[144,128]{1,0:T(1,128)}', space=vmem, size = 0x12000, scoped, tag = 'internal scratch']
  #allocation2 [shape = 'f32[1,128]{1,0:T(1,128)}', space=vmem, size = 0x200, scoped, tag = 'scratch operand']
  #allocation3 [shape = 'f32[1]{0:T(128)S(6)}', space=smem, size = 0x200, scoped, tag = 'scoped memory for tpu_custom_call.1']
  %s0 = inlined_call_operand.vmem [shape: f32[8,128], index: 0, kind: input, shape index: {}]
  %s1 = inlined_call_operand.vmem [shape: f32[128,8], index: 1, kind: input, shape index: {}]
  %s2 = inlined_call_operand.vmem [shape: f32[1,128], index: 2, kind: input, shape index: {}]
  %s3 = inlined_call_operand.<no memory space> [shape: f32[1], index: 3, kind: input, shape index: {}]
  %s4 = inlined_call_operand.hbm [shape: f32[1,128], index: 4, kind: output, shape index: {}]
  %s5 = sld [smem:[#allocation0]]
  $region34: #{tpu_custom_call.1} parent=0
    _
  %s7 = ssub.s32 1, %s5
  %s8 = scalar_select 0, %s7, %s5
  %9 = sst [smem:[#allocation3]] %s3
  $region1: #{tpu_custom_call.1} parent=0
    #allocation4 [shape = 'u8[512]{0}', space=vmem, size = 0x400, scoped, tag = 'output window, operand 0, single buffered']
    #allocation5 [shape = 's32[1]{0}', space=sflag, size = 0x4, scoped, tag = 'scoped memory for tpu_custom_call.1']
    %10 = vsyncpa [#allocation5], 0
    // Predicated region
    $region2: #{tpu_custom_call.1} parent=1 // pred_check
      _
    $region3: #{tpu_custom_call.1} parent=1 // pred_check_branch
      %12 = sbr.rel (0) target = $region5
    $region4: #{tpu_custom_call.1} parent=1 // pred_region
      _
    $region5: #{tpu_custom_call.1} parent=1 // pred_fallthru
      _
    // Predicated region
    $region6: #{tpu_custom_call.1} parent=1 // pred_check
      _
    $region7: #{tpu_custom_call.1} parent=1 // pred_check_branch
      %14 = sbr.rel (0) target = $region9
    $region8: #{tpu_custom_call.1} parent=1 // pred_region
      _
    $region9: #{tpu_custom_call.1} parent=1 // pred_fallthru
      _
    // Predicated region
    $region10: #{tpu_custom_call.1} parent=1 // pred_check
      _
    $region11: #{tpu_custom_call.1} parent=1 // pred_check_branch
      %16 = sbr.rel (0) target = $region13
    $region12: #{tpu_custom_call.1} parent=1 // pred_region
      _
    $region13: #{tpu_custom_call.1} parent=1 // pred_fallthru
      _
    // Predicated region
    $region14: #{tpu_custom_call.1} parent=1 // pred_check
      _
    $region15: #{tpu_custom_call.1} parent=1 // pred_check_branch
      %18 = sbr.rel (0) target = $region17
    $region16: #{tpu_custom_call.1} parent=1 // pred_region
      _
    $region17: #{tpu_custom_call.1} parent=1 // pred_fallthru
      _
    %p19 = scmp.eq.s32.totalorder 0, 0
    // Predicated region
    $region18: #{tpu_custom_call.1} parent=1 // pred_check
      %p20 = pneg %p19
    $region19: #{tpu_custom_call.1} parent=1 // pred_check_branch
      %22 = sbr.rel (%p20) target = $region21
    $region20: #{tpu_custom_call.1} parent=1 // pred_region
      %23 = vst [vmem:[#allocation2] sm:$0x1] 0.0
    $region21: #{tpu_custom_call.1} parent=1 // pred_fallthru
      _
    %v24 = vld [vmem:[%s1] sm:$0xff]
    %v25 = vld [vmem:[%s1 + $0x8] sm:$0xff]
    %v26 = vld [vmem:[%s1 + $0x10] sm:$0xff]
    %v27 = vld [vmem:[%s1 + $0x18] sm:$0xff]
    %v28 = vld [vmem:[%s1 + $0x20] sm:$0xff]
    %v29 = vld [vmem:[%s1 + $0x28] sm:$0xff]
    %v30 = vld [vmem:[%s1 + $0x30] sm:$0xff]
    %v31 = vld [vmem:[%s1 + $0x38] sm:$0xff]
    %v32 = vld [vmem:[%s1 + $0x40] sm:$0xff]
    %v33 = vld [vmem:[%s1 + $0x48] sm:$0xff]
    %v34 = vld [vmem:[%s1 + $0x50] sm:$0xff]
    %v35 = vld [vmem:[%s1 + $0x58] sm:$0xff]
    %v36 = vld [vmem:[%s1 + $0x60] sm:$0xff]
    %v37 = vld [vmem:[%s1 + $0x68] sm:$0xff]
    %v38 = vld [vmem:[%s1 + $0x70] sm:$0xff]
    %v39 = vld [vmem:[%s1 + $0x78] sm:$0xff]
    %v40 = vld [vmem:[%s0] sm:$0xff]
    %vm41 = vcmask 64512
    %v43 = vsel %vm41, %v24, 0
    %v46 = vsel %vm41, %v25, 0
    %v49 = vsel %vm41, %v26, 0
    %v52 = vsel %vm41, %v27, 0
    %v55 = vsel %vm41, %v28, 0
    %v58 = vsel %vm41, %v29, 0
    %v61 = vsel %vm41, %v30, 0
    %v64 = vsel %vm41, %v31, 0
    %v67 = vsel %vm41, %v32, 0
    %v70 = vsel %vm41, %v33, 0
    %v73 = vsel %vm41, %v34, 0
    %v76 = vsel %vm41, %v35, 0
    %v79 = vsel %vm41, %v36, 0
    %v82 = vsel %vm41, %v37, 0
    %v85 = vsel %vm41, %v38, 0
    %v88 = vsel %vm41, %v39, 0
    %90 = vmatprep.subr.mxu0 0.0
    %91 = vmatpush1.msra.mxu0 0.0
    %92 = vmatprep.subr.mxu0 0.0
    %93 = vmatpush1.msra.mxu0 0.0
    %94 = vmatprep.subr.mxu0 0.0
    %95 = vmatpush1.msra.mxu0 0.0
    %96 = vmatprep.subr.mxu0 0.0
    %97 = vmatpush1.msra.mxu0 0.0
    %98 = vmatprep.subr.mxu0 0.0
    %99 = vmatpush1.msra.mxu0 0.0
    %100 = vmatprep.subr.mxu0 0.0
    %101 = vmatpush1.msra.mxu0 0.0
    %102 = vmatprep.subr.mxu0 0.0
    %103 = vmatpush1.msra.mxu0 0.0
    %104 = vmatprep.subr.mxu0 0.0
    %105 = vmatpush1.msra.mxu0 0.0
    %106 = vmatprep.subr.mxu0 0.0
    %107 = vmatpush1.msra.mxu0 0.0
    %108 = vmatprep.subr.mxu0 0.0
    %109 = vmatpush1.msra.mxu0 0.0
    %110 = vmatprep.subr.mxu0 0.0
    %111 = vmatpush1.msra.mxu0 0.0
    %112 = vmatprep.subr.mxu0 0.0
    %113 = vmatpush1.msra.mxu0 0.0
    %114 = vmatprep.subr.mxu0 0.0
    %115 = vmatpush1.msra.mxu0 0.0
    %116 = vmatprep.subr.mxu0 0.0
    %117 = vmatpush1.msra.mxu0 0.0
    %118 = vmatprep.subr.mxu0 0.0
    %119 = vmatpush1.msra.mxu0 0.0
    %120 = vmatprep.subr.mxu0 0.0
    %v121 = vand.u32 %v40, 4294901760
    %122 = vmatpush1.msra.mxu0 %v121
    %123 = vmatprep.subr.mxu0 0.0
    %124 = vmatpush2.msra.mxu0 0.0
    %125 = vmatprep.subr.mxu0 0.0
    %126 = vmatpush2.msra.mxu0 0.0
    %127 = vmatprep.subr.mxu0 0.0
    %128 = vmatpush2.msra.mxu0 0.0
    %129 = vmatprep.subr.mxu0 0.0
    %130 = vmatpush2.msra.mxu0 0.0
    %131 = vmatprep.subr.mxu0 0.0
    %132 = vmatpush2.msra.mxu0 0.0
    %133 = vmatprep.subr.mxu0 0.0
    %134 = vmatpush2.msra.mxu0 0.0
    %135 = vmatprep.subr.mxu0 0.0
    %136 = vmatpush2.msra.mxu0 0.0
    %137 = vmatprep.subr.mxu0 0.0
    %138 = vmatpush2.msra.mxu0 0.0
    %139 = vmatprep.subr.mxu0 0.0
    %140 = vmatpush2.msra.mxu0 0.0
    %141 = vmatprep.subr.mxu0 0.0
    %142 = vmatpush2.msra.mxu0 0.0
    %143 = vmatprep.subr.mxu0 0.0
    %144 = vmatpush2.msra.mxu0 0.0
    %145 = vmatprep.subr.mxu0 0.0
    %146 = vmatpush2.msra.mxu0 0.0
    %147 = vmatprep.subr.mxu0 0.0
    %148 = vmatpush2.msra.mxu0 0.0
    %149 = vmatprep.subr.mxu0 0.0
    %150 = vmatpush2.msra.mxu0 0.0
    %151 = vmatprep.subr.mxu0 0.0
    %152 = vmatpush2.msra.mxu0 0.0
    %153 = vmatprep.subr.mxu0 0.0
    %154 = vmatpush2.msra.mxu0 0.0
    %155 = vmatprep.mubr.f32.mxu0 0.0
    %v156 = vand.u32 %v43, 4294901760
    %v157 = vsub.f32 %v43, %v156
    %v158 = vand.u32 %v157, 4294901760
    %v159 = vsub.f32 %v157, %v158
    %v160 = vand.u32 %v159, 4294901760
    %161 = vmatmul.mubr.f32.gmra.mxu0 %v160
    %v162 = vpop.f32.mrf.mxu0
    %v163 = vadd.f32 0.0, %v162
    %v164 = vpop.f32.mrf.mxu0
    %165 = vmatprep.mubr.f32.mxu0 0.0
    %v166 = vand.u32 %v46, 4294901760
    %v167 = vsub.f32 %v46, %v166
    %v168 = vand.u32 %v167, 4294901760
    %v169 = vsub.f32 %v167, %v168
    %v170 = vand.u32 %v169, 4294901760
    %171 = vmatmul.mubr.f32.gmra.mxu0 %v170
    %v172 = vpop.f32.mrf.mxu0
    %v173 = vadd.f32 0.0, %v172
    %v174 = vpop.f32.mrf.mxu0
    %175 = vmatprep.mubr.f32.mxu0 0.0
    %v176 = vand.u32 %v49, 4294901760
    %v177 = vsub.f32 %v49, %v176
    %v178 = vand.u32 %v177, 4294901760
    %v179 = vsub.f32 %v177, %v178
    %v180 = vand.u32 %v179, 4294901760
    %181 = vmatmul.mubr.f32.gmra.mxu0 %v180
    %v182 = vpop.f32.mrf.mxu0
    %v183 = vadd.f32 0.0, %v182
    %v184 = vpop.f32.mrf.mxu0
    %185 = vmatprep.mubr.f32.mxu0 0.0
    %v186 = vand.u32 %v52, 4294901760
    %v187 = vsub.f32 %v52, %v186
    %v188 = vand.u32 %v187, 4294901760
    %v189 = vsub.f32 %v187, %v188
    %v190 = vand.u32 %v189, 4294901760
    %191 = vmatmul.mubr.f32.gmra.mxu0 %v190
    %v192 = vpop.f32.mrf.mxu0
    %v193 = vadd.f32 0.0, %v192
    %v194 = vpop.f32.mrf.mxu0
    %195 = vmatprep.mubr.f32.mxu0 0.0
    %v196 = vand.u32 %v55, 4294901760
    %v197 = vsub.f32 %v55, %v196
    %v198 = vand.u32 %v197, 4294901760
    %v199 = vsub.f32 %v197, %v198
    %v200 = vand.u32 %v199, 4294901760
    %201 = vmatmul.mubr.f32.gmra.mxu0 %v200
    %v202 = vpop.f32.mrf.mxu0
    %v203 = vadd.f32 0.0, %v202
    %v204 = vpop.f32.mrf.mxu0
    %205 = vmatprep.mubr.f32.mxu0 0.0
    %v206 = vand.u32 %v58, 4294901760
    %v207 = vsub.f32 %v58, %v206
    %v208 = vand.u32 %v207, 4294901760
    %v209 = vsub.f32 %v207, %v208
    %v210 = vand.u32 %v209, 4294901760
    %211 = vmatmul.mubr.f32.gmra.mxu0 %v210
    %v212 = vpop.f32.mrf.mxu0
    %v213 = vadd.f32 0.0, %v212
    %v214 = vpop.f32.mrf.mxu0
    %215 = vmatprep.mubr.f32.mxu0 0.0
    %v216 = vand.u32 %v61, 4294901760
    %v217 = vsub.f32 %v61, %v216
    %v218 = vand.u32 %v217, 4294901760
    %v219 = vsub.f32 %v217, %v218
    %v220 = vand.u32 %v219, 4294901760
    %221 = vmatmul.mubr.f32.gmra.mxu0 %v220
    %v222 = vpop.f32.mrf.mxu0
    %v223 = vadd.f32 0.0, %v222
    %v224 = vpop.f32.mrf.mxu0
    %225 = vmatprep.mubr.f32.mxu0 0.0
    %v226 = vand.u32 %v64, 4294901760
    %v227 = vsub.f32 %v64, %v226
    %v228 = vand.u32 %v227, 4294901760
    %v229 = vsub.f32 %v227, %v228
    %v230 = vand.u32 %v229, 4294901760
    %231 = vmatmul.mubr.f32.gmra.mxu0 %v230
    %v232 = vpop.f32.mrf.mxu0
    %v233 = vadd.f32 0.0, %v232
    %v234 = vpop.f32.mrf.mxu0
    %235 = vmatprep.mubr.f32.mxu0 0.0
    %v236 = vand.u32 %v67, 4294901760
    %v237 = vsub.f32 %v67, %v236
    %v238 = vand.u32 %v237, 4294901760
    %v239 = vsub.f32 %v237, %v238
    %v240 = vand.u32 %v239, 4294901760
    %241 = vmatmul.mubr.f32.gmra.mxu0 %v240
    %v242 = vpop.f32.mrf.mxu0
    %v243 = vadd.f32 0.0, %v242
    %v244 = vpop.f32.mrf.mxu0
    %245 = vmatprep.mubr.f32.mxu0 0.0
    %v246 = vand.u32 %v70, 4294901760
    %v247 = vsub.f32 %v70, %v246
    %v248 = vand.u32 %v247, 4294901760
    %v249 = vsub.f32 %v247, %v248
    %v250 = vand.u32 %v249, 4294901760
    %251 = vmatmul.mubr.f32.gmra.mxu0 %v250
    %v252 = vpop.f32.mrf.mxu0
    %v253 = vadd.f32 0.0, %v252
    %v254 = vpop.f32.mrf.mxu0
    %255 = vmatprep.mubr.f32.mxu0 0.0
    %v256 = vand.u32 %v73, 4294901760
    %v257 = vsub.f32 %v73, %v256
    %v258 = vand.u32 %v257, 4294901760
    %v259 = vsub.f32 %v257, %v258
    %v260 = vand.u32 %v259, 4294901760
    %261 = vmatmul.mubr.f32.gmra.mxu0 %v260
    %v262 = vpop.f32.mrf.mxu0
    %v263 = vadd.f32 0.0, %v262
    %v264 = vpop.f32.mrf.mxu0
    %265 = vmatprep.mubr.f32.mxu0 0.0
    %v266 = vand.u32 %v76, 4294901760
    %v267 = vsub.f32 %v76, %v266
    %v268 = vand.u32 %v267, 4294901760
    %v269 = vsub.f32 %v267, %v268
    %v270 = vand.u32 %v269, 4294901760
    %271 = vmatmul.mubr.f32.gmra.mxu0 %v270
    %v272 = vpop.f32.mrf.mxu0
    %v273 = vadd.f32 0.0, %v272
    %v274 = vpop.f32.mrf.mxu0
    %275 = vmatprep.mubr.f32.mxu0 0.0
    %v276 = vand.u32 %v79, 4294901760
    %v277 = vsub.f32 %v79, %v276
    %v278 = vand.u32 %v277, 4294901760
    %v279 = vsub.f32 %v277, %v278
    %v280 = vand.u32 %v279, 4294901760
    %281 = vmatmul.mubr.f32.gmra.mxu0 %v280
    %v282 = vpop.f32.mrf.mxu0
    %v283 = vadd.f32 0.0, %v282
    %v284 = vpop.f32.mrf.mxu0
    %285 = vmatprep.mubr.f32.mxu0 0.0
    %v286 = vand.u32 %v82, 4294901760
    %v287 = vsub.f32 %v82, %v286
    %v288 = vand.u32 %v287, 4294901760
    %v289 = vsub.f32 %v287, %v288
    %v290 = vand.u32 %v289, 4294901760
    %291 = vmatmul.mubr.f32.gmra.mxu0 %v290
    %v292 = vpop.f32.mrf.mxu0
    %v293 = vadd.f32 0.0, %v292
    %v294 = vpop.f32.mrf.mxu0
    %295 = vmatprep.mubr.f32.mxu0 0.0
    %v296 = vand.u32 %v85, 4294901760
    %v297 = vsub.f32 %v85, %v296
    %v298 = vand.u32 %v297, 4294901760
    %v299 = vsub.f32 %v297, %v298
    %v300 = vand.u32 %v299, 4294901760
    %301 = vmatmul.mubr.f32.gmra.mxu0 %v300
    %v302 = vpop.f32.mrf.mxu0
    %v303 = vadd.f32 0.0, %v302
    %v304 = vpop.f32.mrf.mxu0
    %305 = vmatprep.mubr.f32.mxu0 0.0
    %v306 = vand.u32 %v88, 4294901760
    %v307 = vsub.f32 %v88, %v306
    %v308 = vand.u32 %v307, 4294901760
    %v309 = vsub.f32 %v307, %v308
    %v310 = vand.u32 %v309, 4294901760
    %311 = vmatmul.mubr.f32.gmra.mxu0 %v310
    %v312 = vpop.f32.mrf.mxu0
    %v313 = vadd.f32 0.0, %v312
    %v314 = vpop.f32.mrf.mxu0
    %315 = vdwg.mxu0
    %316 = vmatprep.subr.mxu0 0.0
    %317 = vmatpush1.msra.mxu0 0.0
    %318 = vmatprep.subr.mxu0 0.0
    %319 = vmatpush1.msra.mxu0 0.0
    %320 = vmatprep.subr.mxu0 0.0
    %321 = vmatpush1.msra.mxu0 0.0
    %322 = vmatprep.subr.mxu0 0.0
    %323 = vmatpush1.msra.mxu0 0.0
    %324 = vmatprep.subr.mxu0 0.0
    %325 = vmatpush1.msra.mxu0 0.0
    %326 = vmatprep.subr.mxu0 0.0
    %327 = vmatpush1.msra.mxu0 0.0
    %328 = vmatprep.subr.mxu0 0.0
    %329 = vmatpush1.msra.mxu0 0.0
    %330 = vmatprep.subr.mxu0 0.0
    %331 = vmatpush1.msra.mxu0 0.0
    %332 = vmatprep.subr.mxu0 0.0
    %333 = vmatpush1.msra.mxu0 0.0
    %334 = vmatprep.subr.mxu0 0.0
    %335 = vmatpush1.msra.mxu0 0.0
    %336 = vmatprep.subr.mxu0 0.0
    %337 = vmatpush1.msra.mxu0 0.0
    %338 = vmatprep.subr.mxu0 0.0
    %339 = vmatpush1.msra.mxu0 0.0
    %340 = vmatprep.subr.mxu0 0.0
    %341 = vmatpush1.msra.mxu0 0.0
    %342 = vmatprep.subr.mxu0 0.0
    %343 = vmatpush1.msra.mxu0 0.0
    %344 = vmatprep.subr.mxu0 0.0
    %345 = vmatpush1.msra.mxu0 0.0
    %346 = vmatprep.subr.mxu0 0.0
    %v347 = vand.u32 %v40, 4294901760
    %v348 = vsub.f32 %v40, %v347
    %v349 = vand.u32 %v348, 4294901760
    %v350 = vsub.f32 %v348, %v349
    %v351 = vand.u32 %v350, 4294901760
    %352 = vmatpush1.msra.mxu0 %v351
    %353 = vmatprep.subr.mxu0 0.0
    %354 = vmatpush2.msra.mxu0 0.0
    %355 = vmatprep.subr.mxu0 0.0
    %356 = vmatpush2.msra.mxu0 0.0
    %357 = vmatprep.subr.mxu0 0.0
    %358 = vmatpush2.msra.mxu0 0.0
    %359 = vmatprep.subr.mxu0 0.0
    %360 = vmatpush2.msra.mxu0 0.0
    %361 = vmatprep.subr.mxu0 0.0
    %362 = vmatpush2.msra.mxu0 0.0
    %363 = vmatprep.subr.mxu0 0.0
    %364 = vmatpush2.msra.mxu0 0.0
    %365 = vmatprep.subr.mxu0 0.0
    %366 = vmatpush2.msra.mxu0 0.0
    %367 = vmatprep.subr.mxu0 0.0
    %368 = vmatpush2.msra.mxu0 0.0
    %369 = vmatprep.subr.mxu0 0.0
    %370 = vmatpush2.msra.mxu0 0.0
    %371 = vmatprep.subr.mxu0 0.0
    %372 = vmatpush2.msra.mxu0 0.0
    %373 = vmatprep.subr.mxu0 0.0
    %374 = vmatpush2.msra.mxu0 0.0
    %375 = vmatprep.subr.mxu0 0.0
    %376 = vmatpush2.msra.mxu0 0.0
    %377 = vmatprep.subr.mxu0 0.0
    %378 = vmatpush2.msra.mxu0 0.0
    %379 = vmatprep.subr.mxu0 0.0
    %380 = vmatpush2.msra.mxu0 0.0
    %381 = vmatprep.subr.mxu0 0.0
    %382 = vmatpush2.msra.mxu0 0.0
    %383 = vmatprep.subr.mxu0 0.0
    %384 = vmatpush2.msra.mxu0 0.0
    %385 = vmatprep.mubr.f32.mxu0 0.0
    %v386 = vand.u32 %v43, 4294901760
    %387 = vmatmul.mubr.f32.gmra.mxu0 %v386
    %v388 = vpop.f32.mrf.mxu0
    %v389 = vadd.f32 %v163, %v388
    %v390 = vpop.f32.mrf.mxu0
    %391 = vmatprep.mubr.f32.mxu0 0.0
    %v392 = vand.u32 %v46, 4294901760
    %393 = vmatmul.mubr.f32.gmra.mxu0 %v392
    %v394 = vpop.f32.mrf.mxu0
    %v395 = vadd.f32 %v173, %v394
    %v396 = vpop.f32.mrf.mxu0
    %397 = vmatprep.mubr.f32.mxu0 0.0
    %v398 = vand.u32 %v49, 4294901760
    %399 = vmatmul.mubr.f32.gmra.mxu0 %v398
    %v400 = vpop.f32.mrf.mxu0
    %v401 = vadd.f32 %v183, %v400
    %v402 = vpop.f32.mrf.mxu0
    %403 = vmatprep.mubr.f32.mxu0 0.0
    %v404 = vand.u32 %v52, 4294901760
    %405 = vmatmul.mubr.f32.gmra.mxu0 %v404
    %v406 = vpop.f32.mrf.mxu0
    %v407 = vadd.f32 %v193, %v406
    %v408 = vpop.f32.mrf.mxu0
    %409 = vmatprep.mubr.f32.mxu0 0.0
    %v410 = vand.u32 %v55, 4294901760
    %411 = vmatmul.mubr.f32.gmra.mxu0 %v410
    %v412 = vpop.f32.mrf.mxu0
    %v413 = vadd.f32 %v203, %v412
    %v414 = vpop.f32.mrf.mxu0
    %415 = vmatprep.mubr.f32.mxu0 0.0
    %v416 = vand.u32 %v58, 4294901760
    %417 = vmatmul.mubr.f32.gmra.mxu0 %v416
    %v418 = vpop.f32.mrf.mxu0
    %v419 = vadd.f32 %v213, %v418
    %v420 = vpop.f32.mrf.mxu0
    %421 = vmatprep.mubr.f32.mxu0 0.0
    %v422 = vand.u32 %v61, 4294901760
    %423 = vmatmul.mubr.f32.gmra.mxu0 %v422
    %v424 = vpop.f32.mrf.mxu0
    %v425 = vadd.f32 %v223, %v424
    %v426 = vpop.f32.mrf.mxu0
    %427 = vmatprep.mubr.f32.mxu0 0.0
    %v428 = vand.u32 %v64, 4294901760
    %429 = vmatmul.mubr.f32.gmra.mxu0 %v428
    %v430 = vpop.f32.mrf.mxu0
    %v431 = vadd.f32 %v233, %v430
    %v432 = vpop.f32.mrf.mxu0
    %433 = vmatprep.mubr.f32.mxu0 0.0
    %v434 = vand.u32 %v67, 4294901760
    %435 = vmatmul.mubr.f32.gmra.mxu0 %v434
    %v436 = vpop.f32.mrf.mxu0
    %v437 = vadd.f32 %v243, %v436
    %v438 = vpop.f32.mrf.mxu0
    %439 = vmatprep.mubr.f32.mxu0 0.0
    %v440 = vand.u32 %v70, 4294901760
    %441 = vmatmul.mubr.f32.gmra.mxu0 %v440
    %v442 = vpop.f32.mrf.mxu0
    %v443 = vadd.f32 %v253, %v442
    %v444 = vpop.f32.mrf.mxu0
    %445 = vmatprep.mubr.f32.mxu0 0.0
    %v446 = vand.u32 %v73, 4294901760
    %447 = vmatmul.mubr.f32.gmra.mxu0 %v446
    %v448 = vpop.f32.mrf.mxu0
    %v449 = vadd.f32 %v263, %v448
    %v450 = vpop.f32.mrf.mxu0
    %451 = vmatprep.mubr.f32.mxu0 0.0
    %v452 = vand.u32 %v76, 4294901760
    %453 = vmatmul.mubr.f32.gmra.mxu0 %v452
    %v454 = vpop.f32.mrf.mxu0
    %v455 = vadd.f32 %v273, %v454
    %v456 = vpop.f32.mrf.mxu0
    %457 = vmatprep.mubr.f32.mxu0 0.0
    %v458 = vand.u32 %v79, 4294901760
    %459 = vmatmul.mubr.f32.gmra.mxu0 %v458
    %v460 = vpop.f32.mrf.mxu0
    %v461 = vadd.f32 %v283, %v460
    %v462 = vpop.f32.mrf.mxu0
    %463 = vmatprep.mubr.f32.mxu0 0.0
    %v464 = vand.u32 %v82, 4294901760
    %465 = vmatmul.mubr.f32.gmra.mxu0 %v464
    %v466 = vpop.f32.mrf.mxu0
    %v467 = vadd.f32 %v293, %v466
    %v468 = vpop.f32.mrf.mxu0
    %469 = vmatprep.mubr.f32.mxu0 0.0
    %v470 = vand.u32 %v85, 4294901760
    %471 = vmatmul.mubr.f32.gmra.mxu0 %v470
    %v472 = vpop.f32.mrf.mxu0
    %v473 = vadd.f32 %v303, %v472
    %v474 = vpop.f32.mrf.mxu0
    %475 = vmatprep.mubr.f32.mxu0 0.0
    %v476 = vand.u32 %v88, 4294901760
    %477 = vmatmul.mubr.f32.gmra.mxu0 %v476
    %v478 = vpop.f32.mrf.mxu0
    %v479 = vadd.f32 %v313, %v478
    %v480 = vpop.f32.mrf.mxu0
    %481 = vdwg.mxu0
    %482 = vmatprep.subr.mxu0 0.0
    %483 = vmatpush1.msra.mxu0 0.0
    %484 = vmatprep.subr.mxu0 0.0
    %485 = vmatpush1.msra.mxu0 0.0
    %486 = vmatprep.subr.mxu0 0.0
    %487 = vmatpush1.msra.mxu0 0.0
    %488 = vmatprep.subr.mxu0 0.0
    %489 = vmatpush1.msra.mxu0 0.0
    %490 = vmatprep.subr.mxu0 0.0
    %491 = vmatpush1.msra.mxu0 0.0
    %492 = vmatprep.subr.mxu0 0.0
    %493 = vmatpush1.msra.mxu0 0.0
    %494 = vmatprep.subr.mxu0 0.0
    %495 = vmatpush1.msra.mxu0 0.0
    %496 = vmatprep.subr.mxu0 0.0
    %497 = vmatpush1.msra.mxu0 0.0
    %498 = vmatprep.subr.mxu0 0.0
    %499 = vmatpush1.msra.mxu0 0.0
    %500 = vmatprep.subr.mxu0 0.0
    %501 = vmatpush1.msra.mxu0 0.0
    %502 = vmatprep.subr.mxu0 0.0
    %503 = vmatpush1.msra.mxu0 0.0
    %504 = vmatprep.subr.mxu0 0.0
    %505 = vmatpush1.msra.mxu0 0.0
    %506 = vmatprep.subr.mxu0 0.0
    %507 = vmatpush1.msra.mxu0 0.0
    %508 = vmatprep.subr.mxu0 0.0
    %509 = vmatpush1.msra.mxu0 0.0
    %510 = vmatprep.subr.mxu0 0.0
    %511 = vmatpush1.msra.mxu0 0.0
    %512 = vmatprep.subr.mxu0 0.0
    %v513 = vand.u32 %v40, 4294901760
    %v514 = vsub.f32 %v40, %v513
    %515 = vmatpush1.msra.mxu0 %v514
    %516 = vmatprep.subr.mxu0 0.0
    %517 = vmatpush2.msra.mxu0 0.0
    %518 = vmatprep.subr.mxu0 0.0
    %519 = vmatpush2.msra.mxu0 0.0
    %520 = vmatprep.subr.mxu0 0.0
    %521 = vmatpush2.msra.mxu0 0.0
    %522 = vmatprep.subr.mxu0 0.0
    %523 = vmatpush2.msra.mxu0 0.0
    %524 = vmatprep.subr.mxu0 0.0
    %525 = vmatpush2.msra.mxu0 0.0
    %526 = vmatprep.subr.mxu0 0.0
    %527 = vmatpush2.msra.mxu0 0.0
    %528 = vmatprep.subr.mxu0 0.0
    %529 = vmatpush2.msra.mxu0 0.0
    %530 = vmatprep.subr.mxu0 0.0
    %531 = vmatpush2.msra.mxu0 0.0
    %532 = vmatprep.subr.mxu0 0.0
    %533 = vmatpush2.msra.mxu0 0.0
    %534 = vmatprep.subr.mxu0 0.0
    %535 = vmatpush2.msra.mxu0 0.0
    %536 = vmatprep.subr.mxu0 0.0
    %537 = vmatpush2.msra.mxu0 0.0
    %538 = vmatprep.subr.mxu0 0.0
    %539 = vmatpush2.msra.mxu0 0.0
    %540 = vmatprep.subr.mxu0 0.0
    %541 = vmatpush2.msra.mxu0 0.0
    %542 = vmatprep.subr.mxu0 0.0
    %543 = vmatpush2.msra.mxu0 0.0
    %544 = vmatprep.subr.mxu0 0.0
    %545 = vmatpush2.msra.mxu0 0.0
    %546 = vmatprep.subr.mxu0 0.0
    %547 = vmatpush2.msra.mxu0 0.0
    %548 = vmatprep.mubr.f32.mxu0 0.0
    %v549 = vand.u32 %v43, 4294901760
    %v550 = vsub.f32 %v43, %v549
    %551 = vmatmul.mubr.f32.gmra.mxu0 %v550
    %v552 = vpop.f32.mrf.mxu0
    %v553 = vadd.f32 %v389, %v552
    %v554 = vpop.f32.mrf.mxu0
    %555 = vmatprep.mubr.f32.mxu0 0.0
    %v556 = vand.u32 %v46, 4294901760
    %v557 = vsub.f32 %v46, %v556
    %558 = vmatmul.mubr.f32.gmra.mxu0 %v557
    %v559 = vpop.f32.mrf.mxu0
    %v560 = vadd.f32 %v395, %v559
    %v561 = vpop.f32.mrf.mxu0
    %562 = vmatprep.mubr.f32.mxu0 0.0
    %v563 = vand.u32 %v49, 4294901760
    %v564 = vsub.f32 %v49, %v563
    %565 = vmatmul.mubr.f32.gmra.mxu0 %v564
    %v566 = vpop.f32.mrf.mxu0
    %v567 = vadd.f32 %v401, %v566
    %v568 = vpop.f32.mrf.mxu0
    %569 = vmatprep.mubr.f32.mxu0 0.0
    %v570 = vand.u32 %v52, 4294901760
    %v571 = vsub.f32 %v52, %v570
    %572 = vmatmul.mubr.f32.gmra.mxu0 %v571
    %v573 = vpop.f32.mrf.mxu0
    %v574 = vadd.f32 %v407, %v573
    %v575 = vpop.f32.mrf.mxu0
    %576 = vmatprep.mubr.f32.mxu0 0.0
    %v577 = vand.u32 %v55, 4294901760
    %v578 = vsub.f32 %v55, %v577
    %579 = vmatmul.mubr.f32.gmra.mxu0 %v578
    %v580 = vpop.f32.mrf.mxu0
    %v581 = vadd.f32 %v413, %v580
    %v582 = vpop.f32.mrf.mxu0
    %583 = vmatprep.mubr.f32.mxu0 0.0
    %v584 = vand.u32 %v58, 4294901760
    %v585 = vsub.f32 %v58, %v584
    %586 = vmatmul.mubr.f32.gmra.mxu0 %v585
    %v587 = vpop.f32.mrf.mxu0
    %v588 = vadd.f32 %v419, %v587
    %v589 = vpop.f32.mrf.mxu0
    %590 = vmatprep.mubr.f32.mxu0 0.0
    %v591 = vand.u32 %v61, 4294901760
    %v592 = vsub.f32 %v61, %v591
    %593 = vmatmul.mubr.f32.gmra.mxu0 %v592
    %v594 = vpop.f32.mrf.mxu0
    %v595 = vadd.f32 %v425, %v594
    %v596 = vpop.f32.mrf.mxu0
    %597 = vmatprep.mubr.f32.mxu0 0.0
    %v598 = vand.u32 %v64, 4294901760
    %v599 = vsub.f32 %v64, %v598
    %600 = vmatmul.mubr.f32.gmra.mxu0 %v599
    %v601 = vpop.f32.mrf.mxu0
    %v602 = vadd.f32 %v431, %v601
    %v603 = vpop.f32.mrf.mxu0
    %604 = vmatprep.mubr.f32.mxu0 0.0
    %v605 = vand.u32 %v67, 4294901760
    %v606 = vsub.f32 %v67, %v605
    %607 = vmatmul.mubr.f32.gmra.mxu0 %v606
    %v608 = vpop.f32.mrf.mxu0
    %v609 = vadd.f32 %v437, %v608
    %v610 = vpop.f32.mrf.mxu0
    %611 = vmatprep.mubr.f32.mxu0 0.0
    %v612 = vand.u32 %v70, 4294901760
    %v613 = vsub.f32 %v70, %v612
    %614 = vmatmul.mubr.f32.gmra.mxu0 %v613
    %v615 = vpop.f32.mrf.mxu0
    %v616 = vadd.f32 %v443, %v615
    %v617 = vpop.f32.mrf.mxu0
    %618 = vmatprep.mubr.f32.mxu0 0.0
    %v619 = vand.u32 %v73, 4294901760
    %v620 = vsub.f32 %v73, %v619
    %621 = vmatmul.mubr.f32.gmra.mxu0 %v620
    %v622 = vpop.f32.mrf.mxu0
    %v623 = vadd.f32 %v449, %v622
    %v624 = vpop.f32.mrf.mxu0
    %625 = vmatprep.mubr.f32.mxu0 0.0
    %v626 = vand.u32 %v76, 4294901760
    %v627 = vsub.f32 %v76, %v626
    %628 = vmatmul.mubr.f32.gmra.mxu0 %v627
    %v629 = vpop.f32.mrf.mxu0
    %v630 = vadd.f32 %v455, %v629
    %v631 = vpop.f32.mrf.mxu0
    %632 = vmatprep.mubr.f32.mxu0 0.0
    %v633 = vand.u32 %v79, 4294901760
    %v634 = vsub.f32 %v79, %v633
    %635 = vmatmul.mubr.f32.gmra.mxu0 %v634
    %v636 = vpop.f32.mrf.mxu0
    %v637 = vadd.f32 %v461, %v636
    %v638 = vpop.f32.mrf.mxu0
    %639 = vmatprep.mubr.f32.mxu0 0.0
    %v640 = vand.u32 %v82, 4294901760
    %v641 = vsub.f32 %v82, %v640
    %642 = vmatmul.mubr.f32.gmra.mxu0 %v641
    %v643 = vpop.f32.mrf.mxu0
    %v644 = vadd.f32 %v467, %v643
    %v645 = vpop.f32.mrf.mxu0
    %646 = vmatprep.mubr.f32.mxu0 0.0
    %v647 = vand.u32 %v85, 4294901760
    %v648 = vsub.f32 %v85, %v647
    %649 = vmatmul.mubr.f32.gmra.mxu0 %v648
    %v650 = vpop.f32.mrf.mxu0
    %v651 = vadd.f32 %v473, %v650
    %v652 = vpop.f32.mrf.mxu0
    %653 = vmatprep.mubr.f32.mxu0 0.0
    %v654 = vand.u32 %v88, 4294901760
    %v655 = vsub.f32 %v88, %v654
    %656 = vmatmul.mubr.f32.gmra.mxu0 %v655
    %v657 = vpop.f32.mrf.mxu0
    %v658 = vadd.f32 %v479, %v657
    %v659 = vpop.f32.mrf.mxu0
    %660 = vdwg.mxu0
    %661 = vmatprep.subr.mxu0 0.0
    %662 = vmatpush1.msra.mxu0 0.0
    %663 = vmatprep.subr.mxu0 0.0
    %664 = vmatpush1.msra.mxu0 0.0
    %665 = vmatprep.subr.mxu0 0.0
    %666 = vmatpush1.msra.mxu0 0.0
    %667 = vmatprep.subr.mxu0 0.0
    %668 = vmatpush1.msra.mxu0 0.0
    %669 = vmatprep.subr.mxu0 0.0
    %670 = vmatpush1.msra.mxu0 0.0
    %671 = vmatprep.subr.mxu0 0.0
    %672 = vmatpush1.msra.mxu0 0.0
    %673 = vmatprep.subr.mxu0 0.0
    %674 = vmatpush1.msra.mxu0 0.0
    %675 = vmatprep.subr.mxu0 0.0
    %676 = vmatpush1.msra.mxu0 0.0
    %677 = vmatprep.subr.mxu0 0.0
    %678 = vmatpush1.msra.mxu0 0.0
    %679 = vmatprep.subr.mxu0 0.0
    %680 = vmatpush1.msra.mxu0 0.0
    %681 = vmatprep.subr.mxu0 0.0
    %682 = vmatpush1.msra.mxu0 0.0
    %683 = vmatprep.subr.mxu0 0.0
    %684 = vmatpush1.msra.mxu0 0.0
    %685 = vmatprep.subr.mxu0 0.0
    %686 = vmatpush1.msra.mxu0 0.0
    %687 = vmatprep.subr.mxu0 0.0
    %688 = vmatpush1.msra.mxu0 0.0
    %689 = vmatprep.subr.mxu0 0.0
    %690 = vmatpush1.msra.mxu0 0.0
    %691 = vmatprep.subr.mxu0 0.0
    %v692 = vand.u32 %v40, 4294901760
    %693 = vmatpush1.msra.mxu0 %v692
    %694 = vmatprep.subr.mxu0 0.0
    %695 = vmatpush2.msra.mxu0 0.0
    %696 = vmatprep.subr.mxu0 0.0
    %697 = vmatpush2.msra.mxu0 0.0
    %698 = vmatprep.subr.mxu0 0.0
    %699 = vmatpush2.msra.mxu0 0.0
    %700 = vmatprep.subr.mxu0 0.0
    %701 = vmatpush2.msra.mxu0 0.0
    %702 = vmatprep.subr.mxu0 0.0
    %703 = vmatpush2.msra.mxu0 0.0
    %704 = vmatprep.subr.mxu0 0.0
    %705 = vmatpush2.msra.mxu0 0.0
    %706 = vmatprep.subr.mxu0 0.0
    %707 = vmatpush2.msra.mxu0 0.0
    %708 = vmatprep.subr.mxu0 0.0
    %709 = vmatpush2.msra.mxu0 0.0
    %710 = vmatprep.subr.mxu0 0.0
    %711 = vmatpush2.msra.mxu0 0.0
    %712 = vmatprep.subr.mxu0 0.0
    %713 = vmatpush2.msra.mxu0 0.0
    %714 = vmatprep.subr.mxu0 0.0
    %715 = vmatpush2.msra.mxu0 0.0
    %716 = vmatprep.subr.mxu0 0.0
    %717 = vmatpush2.msra.mxu0 0.0
    %718 = vmatprep.subr.mxu0 0.0
    %719 = vmatpush2.msra.mxu0 0.0
    %720 = vmatprep.subr.mxu0 0.0
    %721 = vmatpush2.msra.mxu0 0.0
    %722 = vmatprep.subr.mxu0 0.0
    %723 = vmatpush2.msra.mxu0 0.0
    %724 = vmatprep.subr.mxu0 0.0
    %725 = vmatpush2.msra.mxu0 0.0
    %726 = vmatprep.mubr.f32.mxu0 0.0
    %v727 = vand.u32 %v43, 4294901760
    %v728 = vsub.f32 %v43, %v727
    %v729 = vand.u32 %v728, 4294901760
    %730 = vmatmul.mubr.f32.gmra.mxu0 %v729
    %v731 = vpop.f32.mrf.mxu0
    %v732 = vadd.f32 %v553, %v731
    %v733 = vpop.f32.mrf.mxu0
    %734 = vmatprep.mubr.f32.mxu0 0.0
    %v735 = vand.u32 %v46, 4294901760
    %v736 = vsub.f32 %v46, %v735
    %v737 = vand.u32 %v736, 4294901760
    %738 = vmatmul.mubr.f32.gmra.mxu0 %v737
    %v739 = vpop.f32.mrf.mxu0
    %v740 = vadd.f32 %v560, %v739
    %v741 = vpop.f32.mrf.mxu0
    %742 = vmatprep.mubr.f32.mxu0 0.0
    %v743 = vand.u32 %v49, 4294901760
    %v744 = vsub.f32 %v49, %v743
    %v745 = vand.u32 %v744, 4294901760
    %746 = vmatmul.mubr.f32.gmra.mxu0 %v745
    %v747 = vpop.f32.mrf.mxu0
    %v748 = vadd.f32 %v567, %v747
    %v749 = vpop.f32.mrf.mxu0
    %750 = vmatprep.mubr.f32.mxu0 0.0
    %v751 = vand.u32 %v52, 4294901760
    %v752 = vsub.f32 %v52, %v751
    %v753 = vand.u32 %v752, 4294901760
    %754 = vmatmul.mubr.f32.gmra.mxu0 %v753
    %v755 = vpop.f32.mrf.mxu0
    %v756 = vadd.f32 %v574, %v755
    %v757 = vpop.f32.mrf.mxu0
    %758 = vmatprep.mubr.f32.mxu0 0.0
    %v759 = vand.u32 %v55, 4294901760
    %v760 = vsub.f32 %v55, %v759
    %v761 = vand.u32 %v760, 4294901760
    %762 = vmatmul.mubr.f32.gmra.mxu0 %v761
    %v763 = vpop.f32.mrf.mxu0
    %v764 = vadd.f32 %v581, %v763
    %v765 = vpop.f32.mrf.mxu0
    %766 = vmatprep.mubr.f32.mxu0 0.0
    %v767 = vand.u32 %v58, 4294901760
    %v768 = vsub.f32 %v58, %v767
    %v769 = vand.u32 %v768, 4294901760
    %770 = vmatmul.mubr.f32.gmra.mxu0 %v769
    %v771 = vpop.f32.mrf.mxu0
    %v772 = vadd.f32 %v588, %v771
    %v773 = vpop.f32.mrf.mxu0
    %774 = vmatprep.mubr.f32.mxu0 0.0
    %v775 = vand.u32 %v61, 4294901760
    %v776 = vsub.f32 %v61, %v775
    %v777 = vand.u32 %v776, 4294901760
    %778 = vmatmul.mubr.f32.gmra.mxu0 %v777
    %v779 = vpop.f32.mrf.mxu0
    %v780 = vadd.f32 %v595, %v779
    %v781 = vpop.f32.mrf.mxu0
    %782 = vmatprep.mubr.f32.mxu0 0.0
    %v783 = vand.u32 %v64, 4294901760
    %v784 = vsub.f32 %v64, %v783
    %v785 = vand.u32 %v784, 4294901760
    %786 = vmatmul.mubr.f32.gmra.mxu0 %v785
    %v787 = vpop.f32.mrf.mxu0
    %v788 = vadd.f32 %v602, %v787
    %v789 = vpop.f32.mrf.mxu0
    %790 = vmatprep.mubr.f32.mxu0 0.0
    %v791 = vand.u32 %v67, 4294901760
    %v792 = vsub.f32 %v67, %v791
    %v793 = vand.u32 %v792, 4294901760
    %794 = vmatmul.mubr.f32.gmra.mxu0 %v793
    %v795 = vpop.f32.mrf.mxu0
    %v796 = vadd.f32 %v609, %v795
    %v797 = vpop.f32.mrf.mxu0
    %798 = vmatprep.mubr.f32.mxu0 0.0
    %v799 = vand.u32 %v70, 4294901760
    %v800 = vsub.f32 %v70, %v799
    %v801 = vand.u32 %v800, 4294901760
    %802 = vmatmul.mubr.f32.gmra.mxu0 %v801
    %v803 = vpop.f32.mrf.mxu0
    %v804 = vadd.f32 %v616, %v803
    %v805 = vpop.f32.mrf.mxu0
    %806 = vmatprep.mubr.f32.mxu0 0.0
    %v807 = vand.u32 %v73, 4294901760
    %v808 = vsub.f32 %v73, %v807
    %v809 = vand.u32 %v808, 4294901760
    %810 = vmatmul.mubr.f32.gmra.mxu0 %v809
    %v811 = vpop.f32.mrf.mxu0
    %v812 = vadd.f32 %v623, %v811
    %v813 = vpop.f32.mrf.mxu0
    %814 = vmatprep.mubr.f32.mxu0 0.0
    %v815 = vand.u32 %v76, 4294901760
    %v816 = vsub.f32 %v76, %v815
    %v817 = vand.u32 %v816, 4294901760
    %818 = vmatmul.mubr.f32.gmra.mxu0 %v817
    %v819 = vpop.f32.mrf.mxu0
    %v820 = vadd.f32 %v630, %v819
    %v821 = vpop.f32.mrf.mxu0
    %822 = vmatprep.mubr.f32.mxu0 0.0
    %v823 = vand.u32 %v79, 4294901760
    %v824 = vsub.f32 %v79, %v823
    %v825 = vand.u32 %v824, 4294901760
    %826 = vmatmul.mubr.f32.gmra.mxu0 %v825
    %v827 = vpop.f32.mrf.mxu0
    %v828 = vadd.f32 %v637, %v827
    %v829 = vpop.f32.mrf.mxu0
    %830 = vmatprep.mubr.f32.mxu0 0.0
    %v831 = vand.u32 %v82, 4294901760
    %v832 = vsub.f32 %v82, %v831
    %v833 = vand.u32 %v832, 4294901760
    %834 = vmatmul.mubr.f32.gmra.mxu0 %v833
    %v835 = vpop.f32.mrf.mxu0
    %v836 = vadd.f32 %v644, %v835
    %v837 = vpop.f32.mrf.mxu0
    %838 = vmatprep.mubr.f32.mxu0 0.0
    %v839 = vand.u32 %v85, 4294901760
    %v840 = vsub.f32 %v85, %v839
    %v841 = vand.u32 %v840, 4294901760
    %842 = vmatmul.mubr.f32.gmra.mxu0 %v841
    %v843 = vpop.f32.mrf.mxu0
    %v844 = vadd.f32 %v651, %v843
    %v845 = vpop.f32.mrf.mxu0
    %846 = vmatprep.mubr.f32.mxu0 0.0
    %v847 = vand.u32 %v88, 4294901760
    %v848 = vsub.f32 %v88, %v847
    %v849 = vand.u32 %v848, 4294901760
    %850 = vmatmul.mubr.f32.gmra.mxu0 %v849
    %v851 = vpop.f32.mrf.mxu0
    %v852 = vadd.f32 %v658, %v851
    %v853 = vpop.f32.mrf.mxu0
    %854 = vdwg.mxu0
    %855 = vmatprep.subr.mxu0 0.0
    %856 = vmatpush1.msra.mxu0 0.0
    %857 = vmatprep.subr.mxu0 0.0
    %858 = vmatpush1.msra.mxu0 0.0
    %859 = vmatprep.subr.mxu0 0.0
    %860 = vmatpush1.msra.mxu0 0.0
    %861 = vmatprep.subr.mxu0 0.0
    %862 = vmatpush1.msra.mxu0 0.0
    %863 = vmatprep.subr.mxu0 0.0
    %864 = vmatpush1.msra.mxu0 0.0
    %865 = vmatprep.subr.mxu0 0.0
    %866 = vmatpush1.msra.mxu0 0.0
    %867 = vmatprep.subr.mxu0 0.0
    %868 = vmatpush1.msra.mxu0 0.0
    %869 = vmatprep.subr.mxu0 0.0
    %870 = vmatpush1.msra.mxu0 0.0
    %871 = vmatprep.subr.mxu0 0.0
    %872 = vmatpush1.msra.mxu0 0.0
    %873 = vmatprep.subr.mxu0 0.0
    %874 = vmatpush1.msra.mxu0 0.0
    %875 = vmatprep.subr.mxu0 0.0
    %876 = vmatpush1.msra.mxu0 0.0
    %877 = vmatprep.subr.mxu0 0.0
    %878 = vmatpush1.msra.mxu0 0.0
    %879 = vmatprep.subr.mxu0 0.0
    %880 = vmatpush1.msra.mxu0 0.0
    %881 = vmatprep.subr.mxu0 0.0
    %882 = vmatpush1.msra.mxu0 0.0
    %883 = vmatprep.subr.mxu0 0.0
    %884 = vmatpush1.msra.mxu0 0.0
    %885 = vmatprep.subr.mxu0 0.0
    %v886 = vand.u32 %v40, 4294901760
    %v887 = vsub.f32 %v40, %v886
    %v888 = vand.u32 %v887, 4294901760
    %889 = vmatpush1.msra.mxu0 %v888
    %890 = vmatprep.subr.mxu0 0.0
    %891 = vmatpush2.msra.mxu0 0.0
    %892 = vmatprep.subr.mxu0 0.0
    %893 = vmatpush2.msra.mxu0 0.0
    %894 = vmatprep.subr.mxu0 0.0
    %895 = vmatpush2.msra.mxu0 0.0
    %896 = vmatprep.subr.mxu0 0.0
    %897 = vmatpush2.msra.mxu0 0.0
    %898 = vmatprep.subr.mxu0 0.0
    %899 = vmatpush2.msra.mxu0 0.0
    %900 = vmatprep.subr.mxu0 0.0
    %901 = vmatpush2.msra.mxu0 0.0
    %902 = vmatprep.subr.mxu0 0.0
    %903 = vmatpush2.msra.mxu0 0.0
    %904 = vmatprep.subr.mxu0 0.0
    %905 = vmatpush2.msra.mxu0 0.0
    %906 = vmatprep.subr.mxu0 0.0
    %907 = vmatpush2.msra.mxu0 0.0
    %908 = vmatprep.subr.mxu0 0.0
    %909 = vmatpush2.msra.mxu0 0.0
    %910 = vmatprep.subr.mxu0 0.0
    %911 = vmatpush2.msra.mxu0 0.0
    %912 = vmatprep.subr.mxu0 0.0
    %913 = vmatpush2.msra.mxu0 0.0
    %914 = vmatprep.subr.mxu0 0.0
    %915 = vmatpush2.msra.mxu0 0.0
    %916 = vmatprep.subr.mxu0 0.0
    %917 = vmatpush2.msra.mxu0 0.0
    %918 = vmatprep.subr.mxu0 0.0
    %919 = vmatpush2.msra.mxu0 0.0
    %920 = vmatprep.subr.mxu0 0.0
    %921 = vmatpush2.msra.mxu0 0.0
    %922 = vmatprep.mubr.f32.mxu0 0.0
    %v923 = vand.u32 %v43, 4294901760
    %924 = vmatmul.mubr.f32.gmra.mxu0 %v923
    %v925 = vpop.f32.mrf.mxu0
    %v926 = vadd.f32 %v732, %v925
    %v927 = vpop.f32.mrf.mxu0
    %928 = vmatprep.mubr.f32.mxu0 0.0
    %v929 = vand.u32 %v46, 4294901760
    %930 = vmatmul.mubr.f32.gmra.mxu0 %v929
    %v931 = vpop.f32.mrf.mxu0
    %v932 = vadd.f32 %v740, %v931
    %v933 = vpop.f32.mrf.mxu0
    %934 = vmatprep.mubr.f32.mxu0 0.0
    %v935 = vand.u32 %v49, 4294901760
    %936 = vmatmul.mubr.f32.gmra.mxu0 %v935
    %v937 = vpop.f32.mrf.mxu0
    %v938 = vadd.f32 %v748, %v937
    %v939 = vpop.f32.mrf.mxu0
    %940 = vmatprep.mubr.f32.mxu0 0.0
    %v941 = vand.u32 %v52, 4294901760
    %942 = vmatmul.mubr.f32.gmra.mxu0 %v941
    %v943 = vpop.f32.mrf.mxu0
    %v944 = vadd.f32 %v756, %v943
    %v945 = vpop.f32.mrf.mxu0
    %946 = vmatprep.mubr.f32.mxu0 0.0
    %v947 = vand.u32 %v55, 4294901760
    %948 = vmatmul.mubr.f32.gmra.mxu0 %v947
    %v949 = vpop.f32.mrf.mxu0
    %v950 = vadd.f32 %v764, %v949
    %v951 = vpop.f32.mrf.mxu0
    %952 = vmatprep.mubr.f32.mxu0 0.0
    %v953 = vand.u32 %v58, 4294901760
    %954 = vmatmul.mubr.f32.gmra.mxu0 %v953
    %v955 = vpop.f32.mrf.mxu0
    %v956 = vadd.f32 %v772, %v955
    %v957 = vpop.f32.mrf.mxu0
    %958 = vmatprep.mubr.f32.mxu0 0.0
    %v959 = vand.u32 %v61, 4294901760
    %960 = vmatmul.mubr.f32.gmra.mxu0 %v959
    %v961 = vpop.f32.mrf.mxu0
    %v962 = vadd.f32 %v780, %v961
    %v963 = vpop.f32.mrf.mxu0
    %964 = vmatprep.mubr.f32.mxu0 0.0
    %v965 = vand.u32 %v64, 4294901760
    %966 = vmatmul.mubr.f32.gmra.mxu0 %v965
    %v967 = vpop.f32.mrf.mxu0
    %v968 = vadd.f32 %v788, %v967
    %v969 = vpop.f32.mrf.mxu0
    %970 = vmatprep.mubr.f32.mxu0 0.0
    %v971 = vand.u32 %v67, 4294901760
    %972 = vmatmul.mubr.f32.gmra.mxu0 %v971
    %v973 = vpop.f32.mrf.mxu0
    %v974 = vadd.f32 %v796, %v973
    %v975 = vpop.f32.mrf.mxu0
    %976 = vmatprep.mubr.f32.mxu0 0.0
    %v977 = vand.u32 %v70, 4294901760
    %978 = vmatmul.mubr.f32.gmra.mxu0 %v977
    %v979 = vpop.f32.mrf.mxu0
    %v980 = vadd.f32 %v804, %v979
    %v981 = vpop.f32.mrf.mxu0
    %982 = vmatprep.mubr.f32.mxu0 0.0
    %v983 = vand.u32 %v73, 4294901760
    %984 = vmatmul.mubr.f32.gmra.mxu0 %v983
    %v985 = vpop.f32.mrf.mxu0
    %v986 = vadd.f32 %v812, %v985
    %v987 = vpop.f32.mrf.mxu0
    %988 = vmatprep.mubr.f32.mxu0 0.0
    %v989 = vand.u32 %v76, 4294901760
    %990 = vmatmul.mubr.f32.gmra.mxu0 %v989
    %v991 = vpop.f32.mrf.mxu0
    %v992 = vadd.f32 %v820, %v991
    %v993 = vpop.f32.mrf.mxu0
    %994 = vmatprep.mubr.f32.mxu0 0.0
    %v995 = vand.u32 %v79, 4294901760
    %996 = vmatmul.mubr.f32.gmra.mxu0 %v995
    %v997 = vpop.f32.mrf.mxu0
    %v998 = vadd.f32 %v828, %v997
    %v999 = vpop.f32.mrf.mxu0
    %1000 = vmatprep.mubr.f32.mxu0 0.0
    %v1001 = vand.u32 %v82, 4294901760
    %1002 = vmatmul.mubr.f32.gmra.mxu0 %v1001
    %v1003 = vpop.f32.mrf.mxu0
    %v1004 = vadd.f32 %v836, %v1003
    %v1005 = vpop.f32.mrf.mxu0
    %1006 = vmatprep.mubr.f32.mxu0 0.0
    %v1007 = vand.u32 %v85, 4294901760
    %1008 = vmatmul.mubr.f32.gmra.mxu0 %v1007
    %v1009 = vpop.f32.mrf.mxu0
    %v1010 = vadd.f32 %v844, %v1009
    %v1011 = vpop.f32.mrf.mxu0
    %1012 = vmatprep.mubr.f32.mxu0 0.0
    %v1013 = vand.u32 %v88, 4294901760
    %1014 = vmatmul.mubr.f32.gmra.mxu0 %v1013
    %v1015 = vpop.f32.mrf.mxu0
    %v1016 = vadd.f32 %v852, %v1015
    %v1017 = vpop.f32.mrf.mxu0
    %1018 = vdwg.mxu0
    %1019 = vmatprep.subr.mxu0 0.0
    %1020 = vmatpush1.msra.mxu0 0.0
    %1021 = vmatprep.subr.mxu0 0.0
    %1022 = vmatpush1.msra.mxu0 0.0
    %1023 = vmatprep.subr.mxu0 0.0
    %1024 = vmatpush1.msra.mxu0 0.0
    %1025 = vmatprep.subr.mxu0 0.0
    %1026 = vmatpush1.msra.mxu0 0.0
    %1027 = vmatprep.subr.mxu0 0.0
    %1028 = vmatpush1.msra.mxu0 0.0
    %1029 = vmatprep.subr.mxu0 0.0
    %1030 = vmatpush1.msra.mxu0 0.0
    %1031 = vmatprep.subr.mxu0 0.0
    %1032 = vmatpush1.msra.mxu0 0.0
    %1033 = vmatprep.subr.mxu0 0.0
    %1034 = vmatpush1.msra.mxu0 0.0
    %1035 = vmatprep.subr.mxu0 0.0
    %1036 = vmatpush1.msra.mxu0 0.0
    %1037 = vmatprep.subr.mxu0 0.0
    %1038 = vmatpush1.msra.mxu0 0.0
    %1039 = vmatprep.subr.mxu0 0.0
    %1040 = vmatpush1.msra.mxu0 0.0
    %1041 = vmatprep.subr.mxu0 0.0
    %1042 = vmatpush1.msra.mxu0 0.0
    %1043 = vmatprep.subr.mxu0 0.0
    %1044 = vmatpush1.msra.mxu0 0.0
    %1045 = vmatprep.subr.mxu0 0.0
    %1046 = vmatpush1.msra.mxu0 0.0
    %1047 = vmatprep.subr.mxu0 0.0
    %1048 = vmatpush1.msra.mxu0 0.0
    %1049 = vmatprep.subr.mxu0 0.0
    %v1050 = vand.u32 %v40, 4294901760
    %1051 = vmatpush1.msra.mxu0 %v1050
    %1052 = vmatprep.subr.mxu0 0.0
    %1053 = vmatpush2.msra.mxu0 0.0
    %1054 = vmatprep.subr.mxu0 0.0
    %1055 = vmatpush2.msra.mxu0 0.0
    %1056 = vmatprep.subr.mxu0 0.0
    %1057 = vmatpush2.msra.mxu0 0.0
    %1058 = vmatprep.subr.mxu0 0.0
    %1059 = vmatpush2.msra.mxu0 0.0
    %1060 = vmatprep.subr.mxu0 0.0
    %1061 = vmatpush2.msra.mxu0 0.0
    %1062 = vmatprep.subr.mxu0 0.0
    %1063 = vmatpush2.msra.mxu0 0.0
    %1064 = vmatprep.subr.mxu0 0.0
    %1065 = vmatpush2.msra.mxu0 0.0
    %1066 = vmatprep.subr.mxu0 0.0
    %1067 = vmatpush2.msra.mxu0 0.0
    %1068 = vmatprep.subr.mxu0 0.0
    %1069 = vmatpush2.msra.mxu0 0.0
    %1070 = vmatprep.subr.mxu0 0.0
    %1071 = vmatpush2.msra.mxu0 0.0
    %1072 = vmatprep.subr.mxu0 0.0
    %1073 = vmatpush2.msra.mxu0 0.0
    %1074 = vmatprep.subr.mxu0 0.0
    %1075 = vmatpush2.msra.mxu0 0.0
    %1076 = vmatprep.subr.mxu0 0.0
    %1077 = vmatpush2.msra.mxu0 0.0
    %1078 = vmatprep.subr.mxu0 0.0
    %1079 = vmatpush2.msra.mxu0 0.0
    %1080 = vmatprep.subr.mxu0 0.0
    %1081 = vmatpush2.msra.mxu0 0.0
    %1082 = vmatprep.subr.mxu0 0.0
    %1083 = vmatpush2.msra.mxu0 0.0
    %1084 = vmatprep.mubr.f32.mxu0 0.0
    %v1085 = vand.u32 %v43, 4294901760
    %1086 = vmatmul.mubr.f32.gmra.mxu0 %v1085
    %v1087 = vpop.f32.mrf.mxu0
    %v1088 = vadd.f32 %v926, %v1087
    %v1089 = vpop.f32.mrf.mxu0
    %1090 = vmatprep.mubr.f32.mxu0 0.0
    %v1091 = vand.u32 %v46, 4294901760
    %1092 = vmatmul.mubr.f32.gmra.mxu0 %v1091
    %v1093 = vpop.f32.mrf.mxu0
    %v1094 = vadd.f32 %v932, %v1093
    %v1095 = vpop.f32.mrf.mxu0
    %1096 = vmatprep.mubr.f32.mxu0 0.0
    %v1097 = vand.u32 %v49, 4294901760
    %1098 = vmatmul.mubr.f32.gmra.mxu0 %v1097
    %v1099 = vpop.f32.mrf.mxu0
    %v1100 = vadd.f32 %v938, %v1099
    %v1101 = vpop.f32.mrf.mxu0
    %1102 = vmatprep.mubr.f32.mxu0 0.0
    %v1103 = vand.u32 %v52, 4294901760
    %1104 = vmatmul.mubr.f32.gmra.mxu0 %v1103
    %v1105 = vpop.f32.mrf.mxu0
    %v1106 = vadd.f32 %v944, %v1105
    %v1107 = vpop.f32.mrf.mxu0
    %1108 = vmatprep.mubr.f32.mxu0 0.0
    %v1109 = vand.u32 %v55, 4294901760
    %1110 = vmatmul.mubr.f32.gmra.mxu0 %v1109
    %v1111 = vpop.f32.mrf.mxu0
    %v1112 = vadd.f32 %v950, %v1111
    %v1113 = vpop.f32.mrf.mxu0
    %1114 = vmatprep.mubr.f32.mxu0 0.0
    %v1115 = vand.u32 %v58, 4294901760
    %1116 = vmatmul.mubr.f32.gmra.mxu0 %v1115
    %v1117 = vpop.f32.mrf.mxu0
    %v1118 = vadd.f32 %v956, %v1117
    %v1119 = vpop.f32.mrf.mxu0
    %1120 = vmatprep.mubr.f32.mxu0 0.0
    %v1121 = vand.u32 %v61, 4294901760
    %1122 = vmatmul.mubr.f32.gmra.mxu0 %v1121
    %v1123 = vpop.f32.mrf.mxu0
    %v1124 = vadd.f32 %v962, %v1123
    %v1125 = vpop.f32.mrf.mxu0
    %1126 = vmatprep.mubr.f32.mxu0 0.0
    %v1127 = vand.u32 %v64, 4294901760
    %1128 = vmatmul.mubr.f32.gmra.mxu0 %v1127
    %v1129 = vpop.f32.mrf.mxu0
    %v1130 = vadd.f32 %v968, %v1129
    %v1131 = vpop.f32.mrf.mxu0
    %1132 = vmatprep.mubr.f32.mxu0 0.0
    %v1133 = vand.u32 %v67, 4294901760
    %1134 = vmatmul.mubr.f32.gmra.mxu0 %v1133
    %v1135 = vpop.f32.mrf.mxu0
    %v1136 = vadd.f32 %v974, %v1135
    %v1137 = vpop.f32.mrf.mxu0
    %1138 = vmatprep.mubr.f32.mxu0 0.0
    %v1139 = vand.u32 %v70, 4294901760
    %1140 = vmatmul.mubr.f32.gmra.mxu0 %v1139
    %v1141 = vpop.f32.mrf.mxu0
    %v1142 = vadd.f32 %v980, %v1141
    %v1143 = vpop.f32.mrf.mxu0
    %1144 = vmatprep.mubr.f32.mxu0 0.0
    %v1145 = vand.u32 %v73, 4294901760
    %1146 = vmatmul.mubr.f32.gmra.mxu0 %v1145
    %v1147 = vpop.f32.mrf.mxu0
    %v1148 = vadd.f32 %v986, %v1147
    %v1149 = vpop.f32.mrf.mxu0
    %1150 = vmatprep.mubr.f32.mxu0 0.0
    %v1151 = vand.u32 %v76, 4294901760
    %1152 = vmatmul.mubr.f32.gmra.mxu0 %v1151
    %v1153 = vpop.f32.mrf.mxu0
    %v1154 = vadd.f32 %v992, %v1153
    %v1155 = vpop.f32.mrf.mxu0
    %1156 = vmatprep.mubr.f32.mxu0 0.0
    %v1157 = vand.u32 %v79, 4294901760
    %1158 = vmatmul.mubr.f32.gmra.mxu0 %v1157
    %v1159 = vpop.f32.mrf.mxu0
    %v1160 = vadd.f32 %v998, %v1159
    %v1161 = vpop.f32.mrf.mxu0
    %1162 = vmatprep.mubr.f32.mxu0 0.0
    %v1163 = vand.u32 %v82, 4294901760
    %1164 = vmatmul.mubr.f32.gmra.mxu0 %v1163
    %v1165 = vpop.f32.mrf.mxu0
    %v1166 = vadd.f32 %v1004, %v1165
    %v1167 = vpop.f32.mrf.mxu0
    %1168 = vmatprep.mubr.f32.mxu0 0.0
    %v1169 = vand.u32 %v85, 4294901760
    %1170 = vmatmul.mubr.f32.gmra.mxu0 %v1169
    %v1171 = vpop.f32.mrf.mxu0
    %v1172 = vadd.f32 %v1010, %v1171
    %v1173 = vpop.f32.mrf.mxu0
    %1174 = vmatprep.mubr.f32.mxu0 0.0
    %v1175 = vand.u32 %v88, 4294901760
    %1176 = vmatmul.mubr.f32.gmra.mxu0 %v1175
    %v1177 = vpop.f32.mrf.mxu0
    %v1178 = vadd.f32 %v1016, %v1177
    %v1179 = vpop.f32.mrf.mxu0
    %1180 = vdwg.mxu0
    %vm1181 = vcmp.eq.f32.partialorder %v1088, 0.0
    %vm1182 = vcmp.eq.f32.partialorder %v1094, 0.0
    %vm1183 = vcmp.eq.f32.partialorder %v1100, 0.0
    %vm1184 = vcmp.eq.f32.partialorder %v1106, 0.0
    %vm1185 = vcmp.eq.f32.partialorder %v1112, 0.0
    %vm1186 = vcmp.eq.f32.partialorder %v1118, 0.0
    %vm1187 = vcmp.eq.f32.partialorder %v1124, 0.0
    %vm1188 = vcmp.eq.f32.partialorder %v1130, 0.0
    %vm1189 = vcmp.eq.f32.partialorder %v1136, 0.0
    %vm1190 = vcmp.eq.f32.partialorder %v1142, 0.0
    %vm1191 = vcmp.eq.f32.partialorder %v1148, 0.0
    %vm1192 = vcmp.eq.f32.partialorder %v1154, 0.0
    %vm1193 = vcmp.eq.f32.partialorder %v1160, 0.0
    %vm1194 = vcmp.eq.f32.partialorder %v1166, 0.0
    %vm1195 = vcmp.eq.f32.partialorder %v1172, 0.0
    %vm1196 = vcmp.eq.f32.partialorder %v1178, 0.0
    %v1197 = vsel %vm1181, 1, 0
    %v1198 = vsel %vm1182, 1, 0
    %v1199 = vsel %vm1183, 1, 0
    %v1200 = vsel %vm1184, 1, 0
    %v1201 = vsel %vm1185, 1, 0
    %v1202 = vsel %vm1186, 1, 0
    %v1203 = vsel %vm1187, 1, 0
    %v1204 = vsel %vm1188, 1, 0
    %v1205 = vsel %vm1189, 1, 0
    %v1206 = vsel %vm1190, 1, 0
    %v1207 = vsel %vm1191, 1, 0
    %v1208 = vsel %vm1192, 1, 0
    %v1209 = vsel %vm1193, 1, 0
    %v1210 = vsel %vm1194, 1, 0
    %v1211 = vsel %vm1195, 1, 0
    %v1212 = vsel %vm1196, 1, 0
    %v1213 = vcvt.s32.f32 %v1197
    %v1214 = vcvt.s32.f32 %v1198
    %v1215 = vcvt.s32.f32 %v1199
    %v1216 = vcvt.s32.f32 %v1200
    %v1217 = vcvt.s32.f32 %v1201
    %v1218 = vcvt.s32.f32 %v1202
    %v1219 = vcvt.s32.f32 %v1203
    %v1220 = vcvt.s32.f32 %v1204
    %v1221 = vcvt.s32.f32 %v1205
    %v1222 = vcvt.s32.f32 %v1206
    %v1223 = vcvt.s32.f32 %v1207
    %v1224 = vcvt.s32.f32 %v1208
    %v1225 = vcvt.s32.f32 %v1209
    %v1226 = vcvt.s32.f32 %v1210
    %v1227 = vcvt.s32.f32 %v1211
    %v1228 = vcvt.s32.f32 %v1212
    %v1229 = vld [vmem:[#allocation2] sm:$0x1]
    %v1230 = vld [vmem:[%s2] sm:$0x1]
    %1231 = vmatprep.subr.mxu0 0.0
    %v1232 = vand.u32 %v1228, 4294901760
    %1233 = vmatpush1.msra.mxu0 %v1232
    %1234 = vmatprep.subr.mxu0 0.0
    %v1235 = vand.u32 %v1227, 4294901760
    %1236 = vmatpush1.msra.mxu0 %v1235
    %1237 = vmatprep.subr.mxu0 0.0
    %v1238 = vand.u32 %v1226, 4294901760
    %1239 = vmatpush1.msra.mxu0 %v1238
    %1240 = vmatprep.subr.mxu0 0.0
    %v1241 = vand.u32 %v1225, 4294901760
    %1242 = vmatpush1.msra.mxu0 %v1241
    %1243 = vmatprep.subr.mxu0 0.0
    %v1244 = vand.u32 %v1224, 4294901760
    %1245 = vmatpush1.msra.mxu0 %v1244
    %1246 = vmatprep.subr.mxu0 0.0
    %v1247 = vand.u32 %v1223, 4294901760
    %1248 = vmatpush1.msra.mxu0 %v1247
    %1249 = vmatprep.subr.mxu0 0.0
    %v1250 = vand.u32 %v1222, 4294901760
    %1251 = vmatpush1.msra.mxu0 %v1250
    %1252 = vmatprep.subr.mxu0 0.0
    %v1253 = vand.u32 %v1221, 4294901760
    %1254 = vmatpush1.msra.mxu0 %v1253
    %1255 = vmatprep.subr.mxu0 0.0
    %v1256 = vand.u32 %v1220, 4294901760
    %1257 = vmatpush1.msra.mxu0 %v1256
    %1258 = vmatprep.subr.mxu0 0.0
    %v1259 = vand.u32 %v1219, 4294901760
    %1260 = vmatpush1.msra.mxu0 %v1259
    %1261 = vmatprep.subr.mxu0 0.0
    %v1262 = vand.u32 %v1218, 4294901760
    %1263 = vmatpush1.msra.mxu0 %v1262
    %1264 = vmatprep.subr.mxu0 0.0
    %v1265 = vand.u32 %v1217, 4294901760
    %1266 = vmatpush1.msra.mxu0 %v1265
    %1267 = vmatprep.subr.mxu0 0.0
    %v1268 = vand.u32 %v1216, 4294901760
    %1269 = vmatpush1.msra.mxu0 %v1268
    %1270 = vmatprep.subr.mxu0 0.0
    %v1271 = vand.u32 %v1215, 4294901760
    %1272 = vmatpush1.msra.mxu0 %v1271
    %1273 = vmatprep.subr.mxu0 0.0
    %v1274 = vand.u32 %v1214, 4294901760
    %1275 = vmatpush1.msra.mxu0 %v1274
    %1276 = vmatprep.subr.mxu0 0.0
    %v1277 = vand.u32 %v1213, 4294901760
    %1278 = vmatpush1.msra.mxu0 %v1277
    %1279 = vmatprep.subr.mxu0 0.0
    %1280 = vmatpush2.msra.mxu0 0.0
    %1281 = vmatprep.subr.mxu0 0.0
    %1282 = vmatpush2.msra.mxu0 0.0
    %1283 = vmatprep.subr.mxu0 0.0
    %1284 = vmatpush2.msra.mxu0 0.0
    %1285 = vmatprep.subr.mxu0 0.0
    %1286 = vmatpush2.msra.mxu0 0.0
    %1287 = vmatprep.subr.mxu0 0.0
    %1288 = vmatpush2.msra.mxu0 0.0
    %1289 = vmatprep.subr.mxu0 0.0
    %1290 = vmatpush2.msra.mxu0 0.0
    %1291 = vmatprep.subr.mxu0 0.0
    %1292 = vmatpush2.msra.mxu0 0.0
    %1293 = vmatprep.subr.mxu0 0.0
    %1294 = vmatpush2.msra.mxu0 0.0
    %1295 = vmatprep.subr.mxu0 0.0
    %1296 = vmatpush2.msra.mxu0 0.0
    %1297 = vmatprep.subr.mxu0 0.0
    %1298 = vmatpush2.msra.mxu0 0.0
    %1299 = vmatprep.subr.mxu0 0.0
    %1300 = vmatpush2.msra.mxu0 0.0
    %1301 = vmatprep.subr.mxu0 0.0
    %1302 = vmatpush2.msra.mxu0 0.0
    %1303 = vmatprep.subr.mxu0 0.0
    %1304 = vmatpush2.msra.mxu0 0.0
    %1305 = vmatprep.subr.mxu0 0.0
    %1306 = vmatpush2.msra.mxu0 0.0
    %1307 = vmatprep.subr.mxu0 0.0
    %1308 = vmatpush2.msra.mxu0 0.0
    %1309 = vmatprep.subr.mxu0 0.0
    %1310 = vmatpush2.msra.mxu0 0.0
    %1311 = vmatprep.mubr.f32.mxu0 0.0
    %v1312 = vand.u32 %v1230, 4294901760
    %v1313 = vsub.f32 %v1230, %v1312
    %v1314 = vand.u32 %v1313, 4294901760
    %v1315 = vsub.f32 %v1313, %v1314
    %v1316 = vand.u32 %v1315, 4294901760
    %1317 = vmatmul.mubr.f32.gmra.mxu0 %v1316
    %v1318 = vpop.f32.mrf.mxu0
    %v1319 = vadd.f32 0.0, %v1318
    %v1320 = vpop.f32.mrf.mxu0
    %1321 = vdwg.mxu0
    %1322 = vmatprep.subr.mxu0 0.0
    %v1323 = vand.u32 %v1228, 4294901760
    %v1324 = vsub.f32 %v1228, %v1323
    %v1325 = vand.u32 %v1324, 4294901760
    %v1326 = vsub.f32 %v1324, %v1325
    %v1327 = vand.u32 %v1326, 4294901760
    %1328 = vmatpush1.msra.mxu0 %v1327
    %1329 = vmatprep.subr.mxu0 0.0
    %v1330 = vand.u32 %v1227, 4294901760
    %v1331 = vsub.f32 %v1227, %v1330
    %v1332 = vand.u32 %v1331, 4294901760
    %v1333 = vsub.f32 %v1331, %v1332
    %v1334 = vand.u32 %v1333, 4294901760
    %1335 = vmatpush1.msra.mxu0 %v1334
    %1336 = vmatprep.subr.mxu0 0.0
    %v1337 = vand.u32 %v1226, 4294901760
    %v1338 = vsub.f32 %v1226, %v1337
    %v1339 = vand.u32 %v1338, 4294901760
    %v1340 = vsub.f32 %v1338, %v1339
    %v1341 = vand.u32 %v1340, 4294901760
    %1342 = vmatpush1.msra.mxu0 %v1341
    %1343 = vmatprep.subr.mxu0 0.0
    %v1344 = vand.u32 %v1225, 4294901760
    %v1345 = vsub.f32 %v1225, %v1344
    %v1346 = vand.u32 %v1345, 4294901760
    %v1347 = vsub.f32 %v1345, %v1346
    %v1348 = vand.u32 %v1347, 4294901760
    %1349 = vmatpush1.msra.mxu0 %v1348
    %1350 = vmatprep.subr.mxu0 0.0
    %v1351 = vand.u32 %v1224, 4294901760
    %v1352 = vsub.f32 %v1224, %v1351
    %v1353 = vand.u32 %v1352, 4294901760
    %v1354 = vsub.f32 %v1352, %v1353
    %v1355 = vand.u32 %v1354, 4294901760
    %1356 = vmatpush1.msra.mxu0 %v1355
    %1357 = vmatprep.subr.mxu0 0.0
    %v1358 = vand.u32 %v1223, 4294901760
    %v1359 = vsub.f32 %v1223, %v1358
    %v1360 = vand.u32 %v1359, 4294901760
    %v1361 = vsub.f32 %v1359, %v1360
    %v1362 = vand.u32 %v1361, 4294901760
    %1363 = vmatpush1.msra.mxu0 %v1362
    %1364 = vmatprep.subr.mxu0 0.0
    %v1365 = vand.u32 %v1222, 4294901760
    %v1366 = vsub.f32 %v1222, %v1365
    %v1367 = vand.u32 %v1366, 4294901760
    %v1368 = vsub.f32 %v1366, %v1367
    %v1369 = vand.u32 %v1368, 4294901760
    %1370 = vmatpush1.msra.mxu0 %v1369
    %1371 = vmatprep.subr.mxu0 0.0
    %v1372 = vand.u32 %v1221, 4294901760
    %v1373 = vsub.f32 %v1221, %v1372
    %v1374 = vand.u32 %v1373, 4294901760
    %v1375 = vsub.f32 %v1373, %v1374
    %v1376 = vand.u32 %v1375, 4294901760
    %1377 = vmatpush1.msra.mxu0 %v1376
    %1378 = vmatprep.subr.mxu0 0.0
    %v1379 = vand.u32 %v1220, 4294901760
    %v1380 = vsub.f32 %v1220, %v1379
    %v1381 = vand.u32 %v1380, 4294901760
    %v1382 = vsub.f32 %v1380, %v1381
    %v1383 = vand.u32 %v1382, 4294901760
    %1384 = vmatpush1.msra.mxu0 %v1383
    %1385 = vmatprep.subr.mxu0 0.0
    %v1386 = vand.u32 %v1219, 4294901760
    %v1387 = vsub.f32 %v1219, %v1386
    %v1388 = vand.u32 %v1387, 4294901760
    %v1389 = vsub.f32 %v1387, %v1388
    %v1390 = vand.u32 %v1389, 4294901760
    %1391 = vmatpush1.msra.mxu0 %v1390
    %1392 = vmatprep.subr.mxu0 0.0
    %v1393 = vand.u32 %v1218, 4294901760
    %v1394 = vsub.f32 %v1218, %v1393
    %v1395 = vand.u32 %v1394, 4294901760
    %v1396 = vsub.f32 %v1394, %v1395
    %v1397 = vand.u32 %v1396, 4294901760
    %1398 = vmatpush1.msra.mxu0 %v1397
    %1399 = vmatprep.subr.mxu0 0.0
    %v1400 = vand.u32 %v1217, 4294901760
    %v1401 = vsub.f32 %v1217, %v1400
    %v1402 = vand.u32 %v1401, 4294901760
    %v1403 = vsub.f32 %v1401, %v1402
    %v1404 = vand.u32 %v1403, 4294901760
    %1405 = vmatpush1.msra.mxu0 %v1404
    %1406 = vmatprep.subr.mxu0 0.0
    %v1407 = vand.u32 %v1216, 4294901760
    %v1408 = vsub.f32 %v1216, %v1407
    %v1409 = vand.u32 %v1408, 4294901760
    %v1410 = vsub.f32 %v1408, %v1409
    %v1411 = vand.u32 %v1410, 4294901760
    %1412 = vmatpush1.msra.mxu0 %v1411
    %1413 = vmatprep.subr.mxu0 0.0
    %v1414 = vand.u32 %v1215, 4294901760
    %v1415 = vsub.f32 %v1215, %v1414
    %v1416 = vand.u32 %v1415, 4294901760
    %v1417 = vsub.f32 %v1415, %v1416
    %v1418 = vand.u32 %v1417, 4294901760
    %1419 = vmatpush1.msra.mxu0 %v1418
    %1420 = vmatprep.subr.mxu0 0.0
    %v1421 = vand.u32 %v1214, 4294901760
    %v1422 = vsub.f32 %v1214, %v1421
    %v1423 = vand.u32 %v1422, 4294901760
    %v1424 = vsub.f32 %v1422, %v1423
    %v1425 = vand.u32 %v1424, 4294901760
    %1426 = vmatpush1.msra.mxu0 %v1425
    %1427 = vmatprep.subr.mxu0 0.0
    %v1428 = vand.u32 %v1213, 4294901760
    %v1429 = vsub.f32 %v1213, %v1428
    %v1430 = vand.u32 %v1429, 4294901760
    %v1431 = vsub.f32 %v1429, %v1430
    %v1432 = vand.u32 %v1431, 4294901760
    %1433 = vmatpush1.msra.mxu0 %v1432
    %1434 = vmatprep.subr.mxu0 0.0
    %1435 = vmatpush2.msra.mxu0 0.0
    %1436 = vmatprep.subr.mxu0 0.0
    %1437 = vmatpush2.msra.mxu0 0.0
    %1438 = vmatprep.subr.mxu0 0.0
    %1439 = vmatpush2.msra.mxu0 0.0
    %1440 = vmatprep.subr.mxu0 0.0
    %1441 = vmatpush2.msra.mxu0 0.0
    %1442 = vmatprep.subr.mxu0 0.0
    %1443 = vmatpush2.msra.mxu0 0.0
    %1444 = vmatprep.subr.mxu0 0.0
    %1445 = vmatpush2.msra.mxu0 0.0
    %1446 = vmatprep.subr.mxu0 0.0
    %1447 = vmatpush2.msra.mxu0 0.0
    %1448 = vmatprep.subr.mxu0 0.0
    %1449 = vmatpush2.msra.mxu0 0.0
    %1450 = vmatprep.subr.mxu0 0.0
    %1451 = vmatpush2.msra.mxu0 0.0
    %1452 = vmatprep.subr.mxu0 0.0
    %1453 = vmatpush2.msra.mxu0 0.0
    %1454 = vmatprep.subr.mxu0 0.0
    %1455 = vmatpush2.msra.mxu0 0.0
    %1456 = vmatprep.subr.mxu0 0.0
    %1457 = vmatpush2.msra.mxu0 0.0
    %1458 = vmatprep.subr.mxu0 0.0
    %1459 = vmatpush2.msra.mxu0 0.0
    %1460 = vmatprep.subr.mxu0 0.0
    %1461 = vmatpush2.msra.mxu0 0.0
    %1462 = vmatprep.subr.mxu0 0.0
    %1463 = vmatpush2.msra.mxu0 0.0
    %1464 = vmatprep.subr.mxu0 0.0
    %1465 = vmatpush2.msra.mxu0 0.0
    %1466 = vmatprep.mubr.f32.mxu0 0.0
    %v1467 = vand.u32 %v1230, 4294901760
    %1468 = vmatmul.mubr.f32.gmra.mxu0 %v1467
    %v1469 = vpop.f32.mrf.mxu0
    %v1470 = vadd.f32 %v1319, %v1469
    %v1471 = vpop.f32.mrf.mxu0
    %1472 = vdwg.mxu0
    %1473 = vmatprep.subr.mxu0 0.0
    %v1474 = vand.u32 %v1228, 4294901760
    %v1475 = vsub.f32 %v1228, %v1474
    %1476 = vmatpush1.msra.mxu0 %v1475
    %1477 = vmatprep.subr.mxu0 0.0
    %v1478 = vand.u32 %v1227, 4294901760
    %v1479 = vsub.f32 %v1227, %v1478
    %1480 = vmatpush1.msra.mxu0 %v1479
    %1481 = vmatprep.subr.mxu0 0.0
    %v1482 = vand.u32 %v1226, 4294901760
    %v1483 = vsub.f32 %v1226, %v1482
    %1484 = vmatpush1.msra.mxu0 %v1483
    %1485 = vmatprep.subr.mxu0 0.0
    %v1486 = vand.u32 %v1225, 4294901760
    %v1487 = vsub.f32 %v1225, %v1486
    %1488 = vmatpush1.msra.mxu0 %v1487
    %1489 = vmatprep.subr.mxu0 0.0
    %v1490 = vand.u32 %v1224, 4294901760
    %v1491 = vsub.f32 %v1224, %v1490
    %1492 = vmatpush1.msra.mxu0 %v1491
    %1493 = vmatprep.subr.mxu0 0.0
    %v1494 = vand.u32 %v1223, 4294901760
    %v1495 = vsub.f32 %v1223, %v1494
    %1496 = vmatpush1.msra.mxu0 %v1495
    %1497 = vmatprep.subr.mxu0 0.0
    %v1498 = vand.u32 %v1222, 4294901760
    %v1499 = vsub.f32 %v1222, %v1498
    %1500 = vmatpush1.msra.mxu0 %v1499
    %1501 = vmatprep.subr.mxu0 0.0
    %v1502 = vand.u32 %v1221, 4294901760
    %v1503 = vsub.f32 %v1221, %v1502
    %1504 = vmatpush1.msra.mxu0 %v1503
    %1505 = vmatprep.subr.mxu0 0.0
    %v1506 = vand.u32 %v1220, 4294901760
    %v1507 = vsub.f32 %v1220, %v1506
    %1508 = vmatpush1.msra.mxu0 %v1507
    %1509 = vmatprep.subr.mxu0 0.0
    %v1510 = vand.u32 %v1219, 4294901760
    %v1511 = vsub.f32 %v1219, %v1510
    %1512 = vmatpush1.msra.mxu0 %v1511
    %1513 = vmatprep.subr.mxu0 0.0
    %v1514 = vand.u32 %v1218, 4294901760
    %v1515 = vsub.f32 %v1218, %v1514
    %1516 = vmatpush1.msra.mxu0 %v1515
    %1517 = vmatprep.subr.mxu0 0.0
    %v1518 = vand.u32 %v1217, 4294901760
    %v1519 = vsub.f32 %v1217, %v1518
    %1520 = vmatpush1.msra.mxu0 %v1519
    %1521 = vmatprep.subr.mxu0 0.0
    %v1522 = vand.u32 %v1216, 4294901760
    %v1523 = vsub.f32 %v1216, %v1522
    %1524 = vmatpush1.msra.mxu0 %v1523
    %1525 = vmatprep.subr.mxu0 0.0
    %v1526 = vand.u32 %v1215, 4294901760
    %v1527 = vsub.f32 %v1215, %v1526
    %1528 = vmatpush1.msra.mxu0 %v1527
    %1529 = vmatprep.subr.mxu0 0.0
    %v1530 = vand.u32 %v1214, 4294901760
    %v1531 = vsub.f32 %v1214, %v1530
    %1532 = vmatpush1.msra.mxu0 %v1531
    %1533 = vmatprep.subr.mxu0 0.0
    %v1534 = vand.u32 %v1213, 4294901760
    %v1535 = vsub.f32 %v1213, %v1534
    %1536 = vmatpush1.msra.mxu0 %v1535
    %1537 = vmatprep.subr.mxu0 0.0
    %1538 = vmatpush2.msra.mxu0 0.0
    %1539 = vmatprep.subr.mxu0 0.0
    %1540 = vmatpush2.msra.mxu0 0.0
    %1541 = vmatprep.subr.mxu0 0.0
    %1542 = vmatpush2.msra.mxu0 0.0
    %1543 = vmatprep.subr.mxu0 0.0
    %1544 = vmatpush2.msra.mxu0 0.0
    %1545 = vmatprep.subr.mxu0 0.0
    %1546 = vmatpush2.msra.mxu0 0.0
    %1547 = vmatprep.subr.mxu0 0.0
    %1548 = vmatpush2.msra.mxu0 0.0
    %1549 = vmatprep.subr.mxu0 0.0
    %1550 = vmatpush2.msra.mxu0 0.0
    %1551 = vmatprep.subr.mxu0 0.0
    %1552 = vmatpush2.msra.mxu0 0.0
    %1553 = vmatprep.subr.mxu0 0.0
    %1554 = vmatpush2.msra.mxu0 0.0
    %1555 = vmatprep.subr.mxu0 0.0
    %1556 = vmatpush2.msra.mxu0 0.0
    %1557 = vmatprep.subr.mxu0 0.0
    %1558 = vmatpush2.msra.mxu0 0.0
    %1559 = vmatprep.subr.mxu0 0.0
    %1560 = vmatpush2.msra.mxu0 0.0
    %1561 = vmatprep.subr.mxu0 0.0
    %1562 = vmatpush2.msra.mxu0 0.0
    %1563 = vmatprep.subr.mxu0 0.0
    %1564 = vmatpush2.msra.mxu0 0.0
    %1565 = vmatprep.subr.mxu0 0.0
    %1566 = vmatpush2.msra.mxu0 0.0
    %1567 = vmatprep.subr.mxu0 0.0
    %1568 = vmatpush2.msra.mxu0 0.0
    %1569 = vmatprep.mubr.f32.mxu0 0.0
    %v1570 = vand.u32 %v1230, 4294901760
    %v1571 = vsub.f32 %v1230, %v1570
    %1572 = vmatmul.mubr.f32.gmra.mxu0 %v1571
    %v1573 = vpop.f32.mrf.mxu0
    %v1574 = vadd.f32 %v1470, %v1573
    %v1575 = vpop.f32.mrf.mxu0
    %1576 = vdwg.mxu0
    %1577 = vmatprep.subr.mxu0 0.0
    %v1578 = vand.u32 %v1228, 4294901760
    %1579 = vmatpush1.msra.mxu0 %v1578
    %1580 = vmatprep.subr.mxu0 0.0
    %v1581 = vand.u32 %v1227, 4294901760
    %1582 = vmatpush1.msra.mxu0 %v1581
    %1583 = vmatprep.subr.mxu0 0.0
    %v1584 = vand.u32 %v1226, 4294901760
    %1585 = vmatpush1.msra.mxu0 %v1584
    %1586 = vmatprep.subr.mxu0 0.0
    %v1587 = vand.u32 %v1225, 4294901760
    %1588 = vmatpush1.msra.mxu0 %v1587
    %1589 = vmatprep.subr.mxu0 0.0
    %v1590 = vand.u32 %v1224, 4294901760
    %1591 = vmatpush1.msra.mxu0 %v1590
    %1592 = vmatprep.subr.mxu0 0.0
    %v1593 = vand.u32 %v1223, 4294901760
    %1594 = vmatpush1.msra.mxu0 %v1593
    %1595 = vmatprep.subr.mxu0 0.0
    %v1596 = vand.u32 %v1222, 4294901760
    %1597 = vmatpush1.msra.mxu0 %v1596
    %1598 = vmatprep.subr.mxu0 0.0
    %v1599 = vand.u32 %v1221, 4294901760
    %1600 = vmatpush1.msra.mxu0 %v1599
    %1601 = vmatprep.subr.mxu0 0.0
    %v1602 = vand.u32 %v1220, 4294901760
    %1603 = vmatpush1.msra.mxu0 %v1602
    %1604 = vmatprep.subr.mxu0 0.0
    %v1605 = vand.u32 %v1219, 4294901760
    %1606 = vmatpush1.msra.mxu0 %v1605
    %1607 = vmatprep.subr.mxu0 0.0
    %v1608 = vand.u32 %v1218, 4294901760
    %1609 = vmatpush1.msra.mxu0 %v1608
    %1610 = vmatprep.subr.mxu0 0.0
    %v1611 = vand.u32 %v1217, 4294901760
    %1612 = vmatpush1.msra.mxu0 %v1611
    %1613 = vmatprep.subr.mxu0 0.0
    %v1614 = vand.u32 %v1216, 4294901760
    %1615 = vmatpush1.msra.mxu0 %v1614
    %1616 = vmatprep.subr.mxu0 0.0
    %v1617 = vand.u32 %v1215, 4294901760
    %1618 = vmatpush1.msra.mxu0 %v1617
    %1619 = vmatprep.subr.mxu0 0.0
    %v1620 = vand.u32 %v1214, 4294901760
    %1621 = vmatpush1.msra.mxu0 %v1620
    %1622 = vmatprep.subr.mxu0 0.0
    %v1623 = vand.u32 %v1213, 4294901760
    %1624 = vmatpush1.msra.mxu0 %v1623
    %1625 = vmatprep.subr.mxu0 0.0
    %1626 = vmatpush2.msra.mxu0 0.0
    %1627 = vmatprep.subr.mxu0 0.0
    %1628 = vmatpush2.msra.mxu0 0.0
    %1629 = vmatprep.subr.mxu0 0.0
    %1630 = vmatpush2.msra.mxu0 0.0
    %1631 = vmatprep.subr.mxu0 0.0
    %1632 = vmatpush2.msra.mxu0 0.0
    %1633 = vmatprep.subr.mxu0 0.0
    %1634 = vmatpush2.msra.mxu0 0.0
    %1635 = vmatprep.subr.mxu0 0.0
    %1636 = vmatpush2.msra.mxu0 0.0
    %1637 = vmatprep.subr.mxu0 0.0
    %1638 = vmatpush2.msra.mxu0 0.0
    %1639 = vmatprep.subr.mxu0 0.0
    %1640 = vmatpush2.msra.mxu0 0.0
    %1641 = vmatprep.subr.mxu0 0.0
    %1642 = vmatpush2.msra.mxu0 0.0
    %1643 = vmatprep.subr.mxu0 0.0
    %1644 = vmatpush2.msra.mxu0 0.0
    %1645 = vmatprep.subr.mxu0 0.0
    %1646 = vmatpush2.msra.mxu0 0.0
    %1647 = vmatprep.subr.mxu0 0.0
    %1648 = vmatpush2.msra.mxu0 0.0
    %1649 = vmatprep.subr.mxu0 0.0
    %1650 = vmatpush2.msra.mxu0 0.0
    %1651 = vmatprep.subr.mxu0 0.0
    %1652 = vmatpush2.msra.mxu0 0.0
    %1653 = vmatprep.subr.mxu0 0.0
    %1654 = vmatpush2.msra.mxu0 0.0
    %1655 = vmatprep.subr.mxu0 0.0
    %1656 = vmatpush2.msra.mxu0 0.0
    %1657 = vmatprep.mubr.f32.mxu0 0.0
    %v1658 = vand.u32 %v1230, 4294901760
    %v1659 = vsub.f32 %v1230, %v1658
    %v1660 = vand.u32 %v1659, 4294901760
    %1661 = vmatmul.mubr.f32.gmra.mxu0 %v1660
    %v1662 = vpop.f32.mrf.mxu0
    %v1663 = vadd.f32 %v1574, %v1662
    %v1664 = vpop.f32.mrf.mxu0
    %1665 = vdwg.mxu0
    %1666 = vmatprep.subr.mxu0 0.0
    %v1667 = vand.u32 %v1228, 4294901760
    %v1668 = vsub.f32 %v1228, %v1667
    %v1669 = vand.u32 %v1668, 4294901760
    %1670 = vmatpush1.msra.mxu0 %v1669
    %1671 = vmatprep.subr.mxu0 0.0
    %v1672 = vand.u32 %v1227, 4294901760
    %v1673 = vsub.f32 %v1227, %v1672
    %v1674 = vand.u32 %v1673, 4294901760
    %1675 = vmatpush1.msra.mxu0 %v1674
    %1676 = vmatprep.subr.mxu0 0.0
    %v1677 = vand.u32 %v1226, 4294901760
    %v1678 = vsub.f32 %v1226, %v1677
    %v1679 = vand.u32 %v1678, 4294901760
    %1680 = vmatpush1.msra.mxu0 %v1679
    %1681 = vmatprep.subr.mxu0 0.0
    %v1682 = vand.u32 %v1225, 4294901760
    %v1683 = vsub.f32 %v1225, %v1682
    %v1684 = vand.u32 %v1683, 4294901760
    %1685 = vmatpush1.msra.mxu0 %v1684
    %1686 = vmatprep.subr.mxu0 0.0
    %v1687 = vand.u32 %v1224, 4294901760
    %v1688 = vsub.f32 %v1224, %v1687
    %v1689 = vand.u32 %v1688, 4294901760
    %1690 = vmatpush1.msra.mxu0 %v1689
    %1691 = vmatprep.subr.mxu0 0.0
    %v1692 = vand.u32 %v1223, 4294901760
    %v1693 = vsub.f32 %v1223, %v1692
    %v1694 = vand.u32 %v1693, 4294901760
    %1695 = vmatpush1.msra.mxu0 %v1694
    %1696 = vmatprep.subr.mxu0 0.0
    %v1697 = vand.u32 %v1222, 4294901760
    %v1698 = vsub.f32 %v1222, %v1697
    %v1699 = vand.u32 %v1698, 4294901760
    %1700 = vmatpush1.msra.mxu0 %v1699
    %1701 = vmatprep.subr.mxu0 0.0
    %v1702 = vand.u32 %v1221, 4294901760
    %v1703 = vsub.f32 %v1221, %v1702
    %v1704 = vand.u32 %v1703, 4294901760
    %1705 = vmatpush1.msra.mxu0 %v1704
    %1706 = vmatprep.subr.mxu0 0.0
    %v1707 = vand.u32 %v1220, 4294901760
    %v1708 = vsub.f32 %v1220, %v1707
    %v1709 = vand.u32 %v1708, 4294901760
    %1710 = vmatpush1.msra.mxu0 %v1709
    %1711 = vmatprep.subr.mxu0 0.0
    %v1712 = vand.u32 %v1219, 4294901760
    %v1713 = vsub.f32 %v1219, %v1712
    %v1714 = vand.u32 %v1713, 4294901760
    %1715 = vmatpush1.msra.mxu0 %v1714
    %1716 = vmatprep.subr.mxu0 0.0
    %v1717 = vand.u32 %v1218, 4294901760
    %v1718 = vsub.f32 %v1218, %v1717
    %v1719 = vand.u32 %v1718, 4294901760
    %1720 = vmatpush1.msra.mxu0 %v1719
    %1721 = vmatprep.subr.mxu0 0.0
    %v1722 = vand.u32 %v1217, 4294901760
    %v1723 = vsub.f32 %v1217, %v1722
    %v1724 = vand.u32 %v1723, 4294901760
    %1725 = vmatpush1.msra.mxu0 %v1724
    %1726 = vmatprep.subr.mxu0 0.0
    %v1727 = vand.u32 %v1216, 4294901760
    %v1728 = vsub.f32 %v1216, %v1727
    %v1729 = vand.u32 %v1728, 4294901760
    %1730 = vmatpush1.msra.mxu0 %v1729
    %1731 = vmatprep.subr.mxu0 0.0
    %v1732 = vand.u32 %v1215, 4294901760
    %v1733 = vsub.f32 %v1215, %v1732
    %v1734 = vand.u32 %v1733, 4294901760
    %1735 = vmatpush1.msra.mxu0 %v1734
    %1736 = vmatprep.subr.mxu0 0.0
    %v1737 = vand.u32 %v1214, 4294901760
    %v1738 = vsub.f32 %v1214, %v1737
    %v1739 = vand.u32 %v1738, 4294901760
    %1740 = vmatpush1.msra.mxu0 %v1739
    %1741 = vmatprep.subr.mxu0 0.0
    %v1742 = vand.u32 %v1213, 4294901760
    %v1743 = vsub.f32 %v1213, %v1742
    %v1744 = vand.u32 %v1743, 4294901760
    %1745 = vmatpush1.msra.mxu0 %v1744
    %1746 = vmatprep.subr.mxu0 0.0
    %1747 = vmatpush2.msra.mxu0 0.0
    %1748 = vmatprep.subr.mxu0 0.0
    %1749 = vmatpush2.msra.mxu0 0.0
    %1750 = vmatprep.subr.mxu0 0.0
    %1751 = vmatpush2.msra.mxu0 0.0
    %1752 = vmatprep.subr.mxu0 0.0
    %1753 = vmatpush2.msra.mxu0 0.0
    %1754 = vmatprep.subr.mxu0 0.0
    %1755 = vmatpush2.msra.mxu0 0.0
    %1756 = vmatprep.subr.mxu0 0.0
    %1757 = vmatpush2.msra.mxu0 0.0
    %1758 = vmatprep.subr.mxu0 0.0
    %1759 = vmatpush2.msra.mxu0 0.0
    %1760 = vmatprep.subr.mxu0 0.0
    %1761 = vmatpush2.msra.mxu0 0.0
    %1762 = vmatprep.subr.mxu0 0.0
    %1763 = vmatpush2.msra.mxu0 0.0
    %1764 = vmatprep.subr.mxu0 0.0
    %1765 = vmatpush2.msra.mxu0 0.0
    %1766 = vmatprep.subr.mxu0 0.0
    %1767 = vmatpush2.msra.mxu0 0.0
    %1768 = vmatprep.subr.mxu0 0.0
    %1769 = vmatpush2.msra.mxu0 0.0
    %1770 = vmatprep.subr.mxu0 0.0
    %1771 = vmatpush2.msra.mxu0 0.0
    %1772 = vmatprep.subr.mxu0 0.0
    %1773 = vmatpush2.msra.mxu0 0.0
    %1774 = vmatprep.subr.mxu0 0.0
    %1775 = vmatpush2.msra.mxu0 0.0
    %1776 = vmatprep.subr.mxu0 0.0
    %1777 = vmatpush2.msra.mxu0 0.0
    %1778 = vmatprep.mubr.f32.mxu0 0.0
    %v1779 = vand.u32 %v1230, 4294901760
    %1780 = vmatmul.mubr.f32.gmra.mxu0 %v1779
    %v1781 = vpop.f32.mrf.mxu0
    %v1782 = vadd.f32 %v1663, %v1781
    %v1783 = vpop.f32.mrf.mxu0
    %1784 = vdwg.mxu0
    %1785 = vmatprep.subr.mxu0 0.0
    %v1786 = vand.u32 %v1228, 4294901760
    %1787 = vmatpush1.msra.mxu0 %v1786
    %1788 = vmatprep.subr.mxu0 0.0
    %v1789 = vand.u32 %v1227, 4294901760
    %1790 = vmatpush1.msra.mxu0 %v1789
    %1791 = vmatprep.subr.mxu0 0.0
    %v1792 = vand.u32 %v1226, 4294901760
    %1793 = vmatpush1.msra.mxu0 %v1792
    %1794 = vmatprep.subr.mxu0 0.0
    %v1795 = vand.u32 %v1225, 4294901760
    %1796 = vmatpush1.msra.mxu0 %v1795
    %1797 = vmatprep.subr.mxu0 0.0
    %v1798 = vand.u32 %v1224, 4294901760
    %1799 = vmatpush1.msra.mxu0 %v1798
    %1800 = vmatprep.subr.mxu0 0.0
    %v1801 = vand.u32 %v1223, 4294901760
    %1802 = vmatpush1.msra.mxu0 %v1801
    %1803 = vmatprep.subr.mxu0 0.0
    %v1804 = vand.u32 %v1222, 4294901760
    %1805 = vmatpush1.msra.mxu0 %v1804
    %1806 = vmatprep.subr.mxu0 0.0
    %v1807 = vand.u32 %v1221, 4294901760
    %1808 = vmatpush1.msra.mxu0 %v1807
    %1809 = vmatprep.subr.mxu0 0.0
    %v1810 = vand.u32 %v1220, 4294901760
    %1811 = vmatpush1.msra.mxu0 %v1810
    %1812 = vmatprep.subr.mxu0 0.0
    %v1813 = vand.u32 %v1219, 4294901760
    %1814 = vmatpush1.msra.mxu0 %v1813
    %1815 = vmatprep.subr.mxu0 0.0
    %v1816 = vand.u32 %v1218, 4294901760
    %1817 = vmatpush1.msra.mxu0 %v1816
    %1818 = vmatprep.subr.mxu0 0.0
    %v1819 = vand.u32 %v1217, 4294901760
    %1820 = vmatpush1.msra.mxu0 %v1819
    %1821 = vmatprep.subr.mxu0 0.0
    %v1822 = vand.u32 %v1216, 4294901760
    %1823 = vmatpush1.msra.mxu0 %v1822
    %1824 = vmatprep.subr.mxu0 0.0
    %v1825 = vand.u32 %v1215, 4294901760
    %1826 = vmatpush1.msra.mxu0 %v1825
    %1827 = vmatprep.subr.mxu0 0.0
    %v1828 = vand.u32 %v1214, 4294901760
    %1829 = vmatpush1.msra.mxu0 %v1828
    %1830 = vmatprep.subr.mxu0 0.0
    %v1831 = vand.u32 %v1213, 4294901760
    %1832 = vmatpush1.msra.mxu0 %v1831
    %1833 = vmatprep.subr.mxu0 0.0
    %1834 = vmatpush2.msra.mxu0 0.0
    %1835 = vmatprep.subr.mxu0 0.0
    %1836 = vmatpush2.msra.mxu0 0.0
    %1837 = vmatprep.subr.mxu0 0.0
    %1838 = vmatpush2.msra.mxu0 0.0
    %1839 = vmatprep.subr.mxu0 0.0
    %1840 = vmatpush2.msra.mxu0 0.0
    %1841 = vmatprep.subr.mxu0 0.0
    %1842 = vmatpush2.msra.mxu0 0.0
    %1843 = vmatprep.subr.mxu0 0.0
    %1844 = vmatpush2.msra.mxu0 0.0
    %1845 = vmatprep.subr.mxu0 0.0
    %1846 = vmatpush2.msra.mxu0 0.0
    %1847 = vmatprep.subr.mxu0 0.0
    %1848 = vmatpush2.msra.mxu0 0.0
    %1849 = vmatprep.subr.mxu0 0.0
    %1850 = vmatpush2.msra.mxu0 0.0
    %1851 = vmatprep.subr.mxu0 0.0
    %1852 = vmatpush2.msra.mxu0 0.0
    %1853 = vmatprep.subr.mxu0 0.0
    %1854 = vmatpush2.msra.mxu0 0.0
    %1855 = vmatprep.subr.mxu0 0.0
    %1856 = vmatpush2.msra.mxu0 0.0
    %1857 = vmatprep.subr.mxu0 0.0
    %1858 = vmatpush2.msra.mxu0 0.0
    %1859 = vmatprep.subr.mxu0 0.0
    %1860 = vmatpush2.msra.mxu0 0.0
    %1861 = vmatprep.subr.mxu0 0.0
    %1862 = vmatpush2.msra.mxu0 0.0
    %1863 = vmatprep.subr.mxu0 0.0
    %1864 = vmatpush2.msra.mxu0 0.0
    %1865 = vmatprep.mubr.f32.mxu0 0.0
    %v1866 = vand.u32 %v1230, 4294901760
    %1867 = vmatmul.mubr.f32.gmra.mxu0 %v1866
    %v1868 = vpop.f32.mrf.mxu0
    %v1869 = vadd.f32 %v1782, %v1868
    %v1870 = vpop.f32.mrf.mxu0
    %1871 = vdwg.mxu0
    %v1872 = vadd.f32 %v1229, %v1869
    %1873 = vst [vmem:[#allocation2] sm:$0x1] %v1872
    // Predicated region
    $region22: #{tpu_custom_call.1} parent=1 // pred_check
      %p1874 = pneg %p19
    $region23: #{tpu_custom_call.1} parent=1 // pred_check_branch
      %1876 = sbr.rel (%p1874) target = $region25
    $region24: #{tpu_custom_call.1} parent=1 // pred_region
      %v1877 = vld [vmem:[#allocation2] sm:$0x1]
      %s1878 = sld [smem:[#allocation3]]
      %v1879 = vstv %s1878
      %v1880 = vadd.f32 %v1877, %v1879
      %v1881 = vxor.u32 %v1880, 2147483648
      %v1882 = vmul.f32 %v1881, 1.442695
      %v1883 = vpow.pop %v1882
      %v1884 = vadd.f32 %v1883, 1.0
      %v1885 = vrcp.pop %v1884
      %v1886 = vmul.f32 1.0, %v1885
      %1887 = vst [vmem:[#allocation4] sm:$0x1] %v1886
    $region25: #{tpu_custom_call.1} parent=1 // pred_fallthru
      _
    // Predicated region
    $region26: #{tpu_custom_call.1} parent=1 // pred_check
      _
    $region27: #{tpu_custom_call.1} parent=1 // pred_check_branch
      %1889 = sbr.rel (0) target = $region29
    $region28: #{tpu_custom_call.1} parent=1 // pred_region
      %s1891 = ssub.s32 16, 16
      %1892 = vsyncadd [#allocation5], %s1891
      %s1894 = sshll.u32 [#allocation4], 4
      %s1895 = int_to_ptr.vmem [resolvable:$true] %s1894
      %1897 = dma.vmem_to_hbm [thread:$0]  %s1895, 16, %s4, [#allocation5]
    $region29: #{tpu_custom_call.1} parent=1 // pred_fallthru
      _
    // Predicated region
    $region30: #{tpu_custom_call.1} parent=1 // pred_check
      _
    $region31: #{tpu_custom_call.1} parent=1 // pred_check_branch
      %1899 = sbr.rel (0) target = $region33
    $region32: #{tpu_custom_call.1} parent=1 // pred_region
      %1900 = dma.done [#allocation5], 16
    $region33: #{tpu_custom_call.1} parent=1 // pred_fallthru
      _
    %1901 = vsyncpa [#allocation5], 1

</llo_original>
